<compile_context>
chip_gen: v5e
topology: v5e:2x2
jax: 0.10.0
libtpu: 0.0.40
codegen_flags: <defaults>
</compile_context>

<pallas_src>
import functools

import jax
import jax.numpy as jnp
from jax import lax
from jax.experimental import pallas as pl
from jax.experimental.pallas import tpu as pltpu

HIDDEN_SIZES = [3, 64, 128, 256]   # DenseNet([3, 64, 128, 256, width*rank], ReLU)
SPLIT = 2                          # leading 'parallel' axis of pass 1 (megacore)


# --------------------------------------------------------------------------- #
# Pass 1: fused phi/psi DenseNet + M accumulation + phi spill
# --------------------------------------------------------------------------- #
def _fused_mlp_kernel(a_ref, v_ref,
                      w1_ref, b1_ref, w2_ref, b2_ref,
                      w3p_ref, b3p_ref, w4p_ref, b4p_ref,
                      w3s_ref, b3s_ref, w4s_ref, b4s_ref,
                      m_ref, phi_ref, *, compute_dtype, hidden2):
    t = pl.program_id(2)

    @pl.when(t == 0)
    def _():
        m_ref[...] = jnp.zeros_like(m_ref)

    # ---- fused DenseNet, channel-major: activations are (channels, tn) ------
    x = a_ref[0]                                                      # (3, tn) f32
    # layer 1 (phi | psi concatenated) kept in f32: K=3 pads a full MXU K-tile
    # anyway, and this keeps grid coordinates at full precision.
    h = jnp.dot(w1_ref[...], x, preferred_element_type=jnp.float32)   # (128, tn)
    h = jnp.maximum(h + b1_ref[...], 0.0).astype(compute_dtype)
    # layer 2, block-diagonal (phi -> rows [:hidden2], psi -> rows [hidden2:])
    h = jnp.dot(w2_ref[...], h, preferred_element_type=jnp.float32)   # (256, tn)
    h = jnp.maximum(h + b2_ref[...], 0.0).astype(compute_dtype)
    h_phi = h[:hidden2]                                               # (128, tn)
    h_psi = h[hidden2:]                                               # (128, tn)

    def tail(h2, w3, b3, w4, b4):
        z = jnp.dot(w3[...], h2, preferred_element_type=jnp.float32)  # (256, tn)
        z = jnp.maximum(z + b3[...], 0.0).astype(compute_dtype)
        z = jnp.dot(w4[...], z, preferred_element_type=jnp.float32)   # (wr, tn)
        return z + b4[...]                                            # f32

    phi_t = tail(h_phi, w3p_ref, b3p_ref, w4p_ref, b4p_ref)           # (wr, tn)
    psi_t = tail(h_psi, w3s_ref, b3s_ref, w4s_ref, b4s_ref)           # (wr, tn)

    # spill phi for pass 2 (lane-dense along tn)
    phi_ref[0] = phi_t.astype(phi_ref.dtype)

    # M[b, s] += psi_tile @ v_tile^T  (contract over the point/lane axis)
    contrib = lax.dot_general(psi_t.astype(compute_dtype), v_ref[0],
                              (((1,), (1,)), ((), ())),
                              preferred_element_type=jnp.float32)     # (wr, width)
    m_ref[0] = m_ref[0] + contrib


# --------------------------------------------------------------------------- #
# Pass 2: out_T_tile = M^T[b] @ phi_T_tile  (lane-dense (width, tn) store)
# --------------------------------------------------------------------------- #
def _apply_kernel(mT_ref, phi_ref, o_ref):
    phi = phi_ref[0].astype(jnp.float32)                              # (wr, tn)
    o = jnp.dot(mT_ref[0], phi, preferred_element_type=jnp.float32)   # (width, tn)
    o_ref[0] = o.astype(o_ref.dtype)


# --------------------------------------------------------------------------- #
# Helpers
# --------------------------------------------------------------------------- #
def _choose_tiling(n, max_tile_n):
    """Lane-dense tiling of the point axis.

    Returns (tn, steps, n_pad) with tn a multiple of 128 and
    n_pad = SPLIT * steps * tn >= n (tail points are zero-padded / discarded),
    so awkward n never falls back to a single full-n tile.
    """
    chunks = pl.cdiv(n, 128)
    chunks = pl.cdiv(chunks, SPLIT) * SPLIT
    half = chunks // SPLIT
    max_chunks = max(max_tile_n // 128, 1)
    steps = pl.cdiv(half, max_chunks)
    tile_chunks = pl.cdiv(half, steps)          # balanced tiles
    tn = tile_chunks * 128
    n_pad = SPLIT * steps * tn
    return tn, steps, n_pad


def _build_fused_params(phi_params, psi_params, compute_dtype):
    """Transposed / concatenated / block-diagonal weights for the fused MLP."""
    (w1p, b1p, w2p, b2p, w3p, b3p, w4p, b4p) = phi_params
    (w1s, b1s, w2s, b2s, w3s, b3s, w4s, b4s) = psi_params

    def col(b):                                  # bias -> (out, 1) column, f32
        return jnp.asarray(b, jnp.float32).reshape(-1, 1)

    # layer 1: concatenated, transposed, f32 (full-precision coordinates)
    w1 = jnp.concatenate([w1p.T, w1s.T], axis=0).astype(jnp.float32)   # (128, 3)
    b1 = jnp.concatenate([col(b1p), col(b1s)], axis=0)                 # (128, 1)
    # layer 2: block-diagonal, transposed
    in2, out2 = w2p.shape                                              # (64, 128)
    w2 = jnp.zeros((2 * out2, 2 * in2), jnp.float32)
    w2 = w2.at[:out2, :in2].set(w2p.T).at[out2:, in2:].set(w2s.T)      # (256, 128)
    w2 = w2.astype(compute_dtype)
    b2 = jnp.concatenate([col(b2p), col(b2s)], axis=0)                 # (256, 1)

    def tail(w3, b3, w4, b4):                                          # per network
        return (w3.T.astype(compute_dtype), col(b3),
                w4.T.astype(compute_dtype), col(b4))

    return [w1, b1, w2, b2,
            *tail(w3p, b3p, w4p, b4p), *tail(w3s, b3s, w4s, b4s)]


# --------------------------------------------------------------------------- #
# Forward
# --------------------------------------------------------------------------- #
def lowrank2d_forward(v, a, phi_params, psi_params, *, width, rank=1,
                      max_tile_n=None, compute_dtype=jnp.bfloat16):
    B, nx, ny, cdim = v.shape
    assert cdim == width
    n = nx * ny
    wr = width * rank

    # generation-aware VMEM budget / tile size
    try:
        vmem_cap = int(pltpu.get_tpu_info().vmem_capacity_bytes)
    except Exception:
        vmem_cap = 64 * 1024 * 1024
    vmem_limit = (vmem_cap * 3) // 4            # ~96 MiB on v5e/v6e, ~48 MiB on v7x
    if max_tile_n is None:
        max_tile_n = 8192 if vmem_cap >= 100 * 1024 * 1024 else 4096

    tn, steps, n_pad = _choose_tiling(n, max_tile_n)

    # channel-major (lane-dense along the point axis) inputs; zero-pad the point
    # axis: padded points have v = 0 so they contribute nothing to M, and their
    # outputs are sliced away below.
    a_cm = jnp.transpose(a.reshape(B, n, 3), (0, 2, 1)).astype(jnp.float32)
    v_cm = jnp.transpose(v.reshape(B, n, width), (0, 2, 1)).astype(compute_dtype)
    if n_pad != n:
        pad = ((0, 0), (0, 0), (0, n_pad - n))
        a_cm = jnp.pad(a_cm, pad)
        v_cm = jnp.pad(v_cm, pad)

    phi_params = list(phi_params)
    psi_params = list(psi_params)
    hidden2 = phi_params[2].shape[1]            # 128
    params = _build_fused_params(phi_params, psi_params, compute_dtype)
    # Constant index_map => params stay VMEM-resident across the grid.
    # TODO(synk): pl.Buffered(1) on these BlockSpecs would reclaim a few hundred
    # KB of double-buffer VMEM on v7x; skipped to keep broad compile compat.
    param_specs = [pl.BlockSpec(p.shape, lambda b, s, t, nd=p.ndim: (0,) * nd)
                   for p in params]

    pt_index = lambda b, s, t: (b, 0, s * steps + t)

    # ---- pass 1 (fused): partial M[b, s] + phi spill -------------------------
    m_partial, phi_spill = pl.pallas_call(
        functools.partial(_fused_mlp_kernel,
                          compute_dtype=compute_dtype, hidden2=hidden2),
        out_shape=(jax.ShapeDtypeStruct((B * SPLIT, wr, width), jnp.float32),
                   jax.ShapeDtypeStruct((B, wr, n_pad), compute_dtype)),
        grid=(B, SPLIT, steps),
        in_specs=[pl.BlockSpec((1, 3, tn), pt_index),
                  pl.BlockSpec((1, width, tn), pt_index)] + param_specs,
        out_specs=(pl.BlockSpec((1, wr, width),
                                lambda b, s, t: (b * SPLIT + s, 0, 0)),
                   pl.BlockSpec((1, wr, tn), pt_index)),
        compiler_params=pltpu.CompilerParams(
            dimension_semantics=("parallel", "parallel", "arbitrary"),
            vmem_limit_bytes=vmem_limit),
    )(a_cm, v_cm, *params)

    # fold the SPLIT partial sums and the 1/n normalization into the tiny M,
    # pre-transposed (f32) so pass 2 is a plain A @ B with a lane-dense output.
    m = m_partial.reshape(B, SPLIT, wr, width).sum(axis=1) * (1.0 / n)
    m_t = jnp.transpose(m, (0, 2, 1))                                  # (B, width, wr)

    # ---- pass 2: out_T[b] = M^T[b] @ phi_T[b]  (channel-major output) --------
    out_cm = pl.pallas_call(
        _apply_kernel,
        out_shape=jax.ShapeDtypeStruct((B, width, n_pad), v.dtype),
        grid=(B, SPLIT * steps),
        in_specs=[pl.BlockSpec((1, width, wr), lambda b, t: (b, 0, 0)),
                  pl.BlockSpec((1, wr, tn), lambda b, t: (b, 0, t))],
        out_specs=pl.BlockSpec((1, width, tn), lambda b, t: (b, 0, t)),
        compiler_params=pltpu.CompilerParams(
            dimension_semantics=("parallel", "parallel"),
            vmem_limit_bytes=vmem_limit),
    )(m_t, phi_spill)

    out = jnp.transpose(out_cm[:, :, :n], (0, 2, 1))                   # (B, n, width)
    return out.reshape(B, nx, ny, width)


# --------------------------------------------------------------------------- #
# Parameter init + pure-JAX reference
# --------------------------------------------------------------------------- #
def init_densenet_params(key, out_dim):
    """Deterministic params for DenseNet([3, 64, 128, 256, out_dim])."""
    sizes = HIDDEN_SIZES + [out_dim]
    params = []
    for i in range(len(sizes) - 1):
        key, kw, kb = jax.random.split(key, 3)
        w = jax.random.normal(kw, (sizes[i], sizes[i + 1]), jnp.float32)
        w = w * (1.0 / jnp.sqrt(sizes[i]))
        b = 0.01 * jax.random.normal(kb, (1, sizes[i + 1]), jnp.float32)
        params += [w, b]
    return params, key


def lowrank2d_reference(v, a, phi_params, psi_params, *, width, rank=1):
    """Pure-JAX f32 reference mirroring the PyTorch forward exactly."""
    B, nx, ny, cdim = v.shape
    n = nx * ny

    def mlp(x, params):
        h = x
        nl = len(params) // 2
        for i in range(nl):
            h = h @ params[2 * i] + params[2 * i + 1]
            if i != nl - 1:
                h = jnp.maximum(h, 0.0)
        return h

    a_flat = a.reshape(B, n, 3)
    phi_eval = mlp(a_flat, phi_params).reshape(B, n, width, rank)
    psi_eval = mlp(a_flat, psi_params).reshape(B, n, width, rank)
    Q = jnp.transpose(phi_eval, (0, 3, 1, 2))  # b h l d
    K = jnp.transpose(psi_eval, (0, 3, 1, 2))  # b h m d
    V = v.reshape(B, 1, n, width)              # b 1 m c
    attn_map = jnp.einsum('bhmd,bhmc->bhdc', K, V)
    attn_out = jnp.einsum('bhld,bhdc->blc', Q, attn_map) / n
    return attn_out.reshape(B, nx, ny, cdim)


if __name__ == "__main__":
    width, rank = 4, 1
    B, nx, ny = 2, 16, 16

    key = jax.random.PRNGKey(0)
    key, kv, ka = jax.random.split(key, 3)
    v = jax.random.normal(kv, (B, nx, ny, width), jnp.float32)
    a = jax.random.normal(ka, (B, nx, ny, 3), jnp.float32)

    phi_params, key = init_densenet_params(key, width * rank)
    psi_params, key = init_densenet_params(key, width * rank)

    out = lowrank2d_forward(v, a, phi_params, psi_params, width=width, rank=rank)
    out = jax.block_until_ready(out)

    ref = lowrank2d_reference(v, a, phi_params, psi_params, width=width, rank=rank)
    assert out.shape == (B, nx, ny, width)
    # bf16 MXU compute (f32 layer 1, f32 accumulation): normalized max error.
    err = float(jnp.max(jnp.abs(out - ref)))
    scale = float(jnp.max(jnp.abs(ref)))
    assert err <= 5e-2 * scale + 1e-5, f"max abs err {err} vs scale {scale}"

    print("KERNEL_OK")
</pallas_src>

<mosaic_0001>
module attributes {stable_mosaic.version = 11 : i64} {
  func.func @_fused_mlp_kernel(%arg0: i32, %arg1: i32, %arg2: i32, %arg3: memref<1x3x128xf32, #tpu.memory_space<vmem>>, %arg4: memref<1x4x128xbf16, #tpu.memory_space<vmem>>, %arg5: memref<128x3xf32, #tpu.memory_space<vmem>>, %arg6: memref<128x1xf32, #tpu.memory_space<vmem>>, %arg7: memref<256x128xbf16, #tpu.memory_space<vmem>>, %arg8: memref<256x1xf32, #tpu.memory_space<vmem>>, %arg9: memref<256x128xbf16, #tpu.memory_space<vmem>>, %arg10: memref<256x1xf32, #tpu.memory_space<vmem>>, %arg11: memref<4x256xbf16, #tpu.memory_space<vmem>>, %arg12: memref<4x1xf32, #tpu.memory_space<vmem>>, %arg13: memref<256x128xbf16, #tpu.memory_space<vmem>>, %arg14: memref<256x1xf32, #tpu.memory_space<vmem>>, %arg15: memref<4x256xbf16, #tpu.memory_space<vmem>>, %arg16: memref<4x1xf32, #tpu.memory_space<vmem>>, %arg17: memref<1x4x4xf32, #tpu.memory_space<vmem>>, %arg18: memref<1x4x128xbf16, #tpu.memory_space<vmem>>) attributes {dimension_semantics = [#tpu.dimension_semantics<parallel>, #tpu.dimension_semantics<parallel>, #tpu.dimension_semantics<arbitrary>], iteration_bounds = array<i64: 2, 2, 1>, scalar_prefetch = 0 : i64, scratch_operands = 0 : i64, tpu.core_type = #tpu.core_type<tc>, window_params = [{transform_indices = @transform_0, window_bounds = array<i64: 1, 3, 128>}, {transform_indices = @transform_1, window_bounds = array<i64: 1, 4, 128>}, {pipeline_mode = #tpu.pipeline_mode<synchronous>, transform_indices = @transform_2, window_bounds = array<i64: 128, 3>}, {pipeline_mode = #tpu.pipeline_mode<synchronous>, transform_indices = @transform_3, window_bounds = array<i64: 128, 1>}, {pipeline_mode = #tpu.pipeline_mode<synchronous>, transform_indices = @transform_4, window_bounds = array<i64: 256, 128>}, {pipeline_mode = #tpu.pipeline_mode<synchronous>, transform_indices = @transform_5, window_bounds = array<i64: 256, 1>}, {pipeline_mode = #tpu.pipeline_mode<synchronous>, transform_indices = @transform_6, window_bounds = array<i64: 256, 128>}, {pipeline_mode = #tpu.pipeline_mode<synchronous>, transform_indices = @transform_7, window_bounds = array<i64: 256, 1>}, {pipeline_mode = #tpu.pipeline_mode<synchronous>, transform_indices = @transform_8, window_bounds = array<i64: 4, 256>}, {pipeline_mode = #tpu.pipeline_mode<synchronous>, transform_indices = @transform_9, window_bounds = array<i64: 4, 1>}, {pipeline_mode = #tpu.pipeline_mode<synchronous>, transform_indices = @transform_10, window_bounds = array<i64: 256, 128>}, {pipeline_mode = #tpu.pipeline_mode<synchronous>, transform_indices = @transform_11, window_bounds = array<i64: 256, 1>}, {pipeline_mode = #tpu.pipeline_mode<synchronous>, transform_indices = @transform_12, window_bounds = array<i64: 4, 256>}, {pipeline_mode = #tpu.pipeline_mode<synchronous>, transform_indices = @transform_13, window_bounds = array<i64: 4, 1>}, {transform_indices = @transform_14, window_bounds = array<i64: 1, 4, 4>}, {transform_indices = @transform_15, window_bounds = array<i64: 1, 4, 128>}]} {
    %c0_i32 = arith.constant 0 : i32
    %0 = arith.cmpi eq, %arg2, %c0_i32 : i32
    %1 = arith.extui %0 : i1 to i32
    %c0_i32_0 = arith.constant 0 : i32
    %2 = arith.cmpi ne, %1, %c0_i32_0 : i32
    scf.if %2 {
      %cst_49 = arith.constant 0.000000e+00 : f32
      %63 = vector.broadcast %cst_49 : f32 to vector<1x4x4xf32>
      %c0_50 = arith.constant 0 : index
      %c0_51 = arith.constant 0 : index
      %c0_52 = arith.constant 0 : index
      %64 = vector.load %arg17[%c0_50, %c0_51, %c0_52] : memref<1x4x4xf32, #tpu.memory_space<vmem>>, vector<1x4x4xf32>
      tpu.vector_store %arg17[%c0_50, %c0_51, %c0_52], %63 {strides = array<i32>} : memref<1x4x4xf32, #tpu.memory_space<vmem>>, vector<1x4x4xf32>,
    } else {
    }
    %c0 = arith.constant 0 : index
    %c0_1 = arith.constant 0 : index
    %c0_2 = arith.constant 0 : index
    %3 = vector.load %arg3[%c0, %c0_1, %c0_2] : memref<1x3x128xf32, #tpu.memory_space<vmem>>, vector<1x3x128xf32>
    %4 = vector.shape_cast %3 : vector<1x3x128xf32> to vector<3x128xf32>
    %c0_3 = arith.constant 0 : index
    %c0_4 = arith.constant 0 : index
    %5 = vector.load %arg5[%c0_3, %c0_4] : memref<128x3xf32, #tpu.memory_space<vmem>>, vector<128x3xf32>
    %cst = arith.constant dense<0.000000e+00> : vector<128x128xf32>
    %6 = tpu.matmul %5, %4, %cst {dimension_numbers = #tpu.dot_dimension_numbers<[1], [0], [0], [1], [0, 0, 1, 1], [], []>} : vector<128x3xf32>, vector<3x128xf32>, vector<128x128xf32> -> vector<128x128xf32>
    %c0_5 = arith.constant 0 : index
    %c0_6 = arith.constant 0 : index
    %7 = vector.load %arg6[%c0_5, %c0_6] : memref<128x1xf32, #tpu.memory_space<vmem>>, vector<128x1xf32>
    %8 = vector.broadcast %7 : vector<128x1xf32> to vector<128x128xf32>
    %9 = arith.addf %6, %8 : vector<128x128xf32>
    %cst_7 = arith.constant 0.000000e+00 : f32
    %10 = vector.broadcast %cst_7 : f32 to vector<128x128xf32>
    %11 = arith.maximumf %9, %10 : vector<128x128xf32>
    %12 = arith.truncf %11 : vector<128x128xf32> to vector<128x128xbf16>
    %c0_8 = arith.constant 0 : index
    %c0_9 = arith.constant 0 : index
    %13 = vector.load %arg7[%c0_8, %c0_9] : memref<256x128xbf16, #tpu.memory_space<vmem>>, vector<256x128xbf16>
    %cst_10 = arith.constant dense<0.000000e+00> : vector<256x128xf32>
    %14 = tpu.matmul %13, %12, %cst_10 {dimension_numbers = #tpu.dot_dimension_numbers<[1], [0], [0], [1], [0, 0, 1, 1], [], []>} : vector<256x128xbf16>, vector<128x128xbf16>, vector<256x128xf32> -> vector<256x128xf32>
    %c0_11 = arith.constant 0 : index
    %c0_12 = arith.constant 0 : index
    %15 = vector.load %arg8[%c0_11, %c0_12] : memref<256x1xf32, #tpu.memory_space<vmem>>, vector<256x1xf32>
    %16 = vector.broadcast %15 : vector<256x1xf32> to vector<256x128xf32>
    %17 = arith.addf %14, %16 : vector<256x128xf32>
    %cst_13 = arith.constant 0.000000e+00 : f32
    %18 = vector.broadcast %cst_13 : f32 to vector<256x128xf32>
    %19 = arith.maximumf %17, %18 : vector<256x128xf32>
    %20 = arith.truncf %19 : vector<256x128xf32> to vector<256x128xbf16>
    %21 = vector.extract_strided_slice %20 {offsets = [0, 0], sizes = [128, 128], strides = [1, 1]} : vector<256x128xbf16> to vector<128x128xbf16>
    %22 = vector.extract_strided_slice %20 {offsets = [128, 0], sizes = [128, 128], strides = [1, 1]} : vector<256x128xbf16> to vector<128x128xbf16>
    %c0_14 = arith.constant 0 : index
    %c0_15 = arith.constant 0 : index
    %23 = vector.load %arg9[%c0_14, %c0_15] : memref<256x128xbf16, #tpu.memory_space<vmem>>, vector<256x128xbf16>
    %cst_16 = arith.constant dense<0.000000e+00> : vector<256x128xf32>
    %24 = tpu.matmul %23, %21, %cst_16 {dimension_numbers = #tpu.dot_dimension_numbers<[1], [0], [0], [1], [0, 0, 1, 1], [], []>} : vector<256x128xbf16>, vector<128x128xbf16>, vector<256x128xf32> -> vector<256x128xf32>
    %c0_17 = arith.constant 0 : index
    %c0_18 = arith.constant 0 : index
    %25 = vector.load %arg10[%c0_17, %c0_18] : memref<256x1xf32, #tpu.memory_space<vmem>>, vector<256x1xf32>
    %26 = vector.broadcast %25 : vector<256x1xf32> to vector<256x128xf32>
    %27 = arith.addf %24, %26 : vector<256x128xf32>
    %cst_19 = arith.constant 0.000000e+00 : f32
    %28 = vector.broadcast %cst_19 : f32 to vector<256x128xf32>
    %29 = arith.maximumf %27, %28 : vector<256x128xf32>
    %30 = arith.truncf %29 : vector<256x128xf32> to vector<256x128xbf16>
    %c0_20 = arith.constant 0 : index
    %c0_21 = arith.constant 0 : index
    %31 = vector.load %arg11[%c0_20, %c0_21] : memref<4x256xbf16, #tpu.memory_space<vmem>>, vector<4x256xbf16>
    %cst_22 = arith.constant dense<0.000000e+00> : vector<4x128xf32>
    %32 = tpu.matmul %31, %30, %cst_22 {dimension_numbers = #tpu.dot_dimension_numbers<[1], [0], [0], [1], [0, 0, 1, 1], [], []>} : vector<4x256xbf16>, vector<256x128xbf16>, vector<4x128xf32> -> vector<4x128xf32>
    %c0_23 = arith.constant 0 : index
    %c0_24 = arith.constant 0 : index
    %33 = vector.load %arg12[%c0_23, %c0_24] : memref<4x1xf32, #tpu.memory_space<vmem>>, vector<4x1xf32>
    %34 = vector.broadcast %33 : vector<4x1xf32> to vector<4x128xf32>
    %35 = arith.addf %32, %34 : vector<4x128xf32>
    %c0_25 = arith.constant 0 : index
    %c0_26 = arith.constant 0 : index
    %36 = vector.load %arg13[%c0_25, %c0_26] : memref<256x128xbf16, #tpu.memory_space<vmem>>, vector<256x128xbf16>
    %cst_27 = arith.constant dense<0.000000e+00> : vector<256x128xf32>
    %37 = tpu.matmul %36, %22, %cst_27 {dimension_numbers = #tpu.dot_dimension_numbers<[1], [0], [0], [1], [0, 0, 1, 1], [], []>} : vector<256x128xbf16>, vector<128x128xbf16>, vector<256x128xf32> -> vector<256x128xf32>
    %c0_28 = arith.constant 0 : index
    %c0_29 = arith.constant 0 : index
    %38 = vector.load %arg14[%c0_28, %c0_29] : memref<256x1xf32, #tpu.memory_space<vmem>>, vector<256x1xf32>
    %39 = vector.broadcast %38 : vector<256x1xf32> to vector<256x128xf32>
    %40 = arith.addf %37, %39 : vector<256x128xf32>
    %cst_30 = arith.constant 0.000000e+00 : f32
    %41 = vector.broadcast %cst_30 : f32 to vector<256x128xf32>
    %42 = arith.maximumf %40, %41 : vector<256x128xf32>
    %43 = arith.truncf %42 : vector<256x128xf32> to vector<256x128xbf16>
    %c0_31 = arith.constant 0 : index
    %c0_32 = arith.constant 0 : index
    %44 = vector.load %arg15[%c0_31, %c0_32] : memref<4x256xbf16, #tpu.memory_space<vmem>>, vector<4x256xbf16>
    %cst_33 = arith.constant dense<0.000000e+00> : vector<4x128xf32>
    %45 = tpu.matmul %44, %43, %cst_33 {dimension_numbers = #tpu.dot_dimension_numbers<[1], [0], [0], [1], [0, 0, 1, 1], [], []>} : vector<4x256xbf16>, vector<256x128xbf16>, vector<4x128xf32> -> vector<4x128xf32>
    %c0_34 = arith.constant 0 : index
    %c0_35 = arith.constant 0 : index
    %46 = vector.load %arg16[%c0_34, %c0_35] : memref<4x1xf32, #tpu.memory_space<vmem>>, vector<4x1xf32>
    %47 = vector.broadcast %46 : vector<4x1xf32> to vector<4x128xf32>
    %48 = arith.addf %45, %47 : vector<4x128xf32>
    %49 = arith.truncf %35 : vector<4x128xf32> to vector<4x128xbf16>
    %c0_36 = arith.constant 0 : index
    %c0_37 = arith.constant 0 : index
    %c0_38 = arith.constant 0 : index
    %50 = vector.load %arg18[%c0_36, %c0_37, %c0_38] : memref<1x4x128xbf16, #tpu.memory_space<vmem>>, vector<1x4x128xbf16>
    %51 = vector.shape_cast %50 : vector<1x4x128xbf16> to vector<4x128xbf16>
    %52 = vector.shape_cast %49 : vector<4x128xbf16> to vector<1x4x128xbf16>
    tpu.vector_store %arg18[%c0_36, %c0_37, %c0_38], %52 {strides = array<i32>} : memref<1x4x128xbf16, #tpu.memory_space<vmem>>, vector<1x4x128xbf16>,
    %53 = arith.truncf %48 : vector<4x128xf32> to vector<4x128xbf16>
    %c0_39 = arith.constant 0 : index
    %c0_40 = arith.constant 0 : index
    %c0_41 = arith.constant 0 : index
    %54 = vector.load %arg4[%c0_39, %c0_40, %c0_41] : memref<1x4x128xbf16, #tpu.memory_space<vmem>>, vector<1x4x128xbf16>
    %55 = vector.shape_cast %54 : vector<1x4x128xbf16> to vector<4x128xbf16>
    %cst_42 = arith.constant dense<0.000000e+00> : vector<4x4xf32>
    %56 = tpu.matmul %53, %55, %cst_42 {dimension_numbers = #tpu.dot_dimension_numbers<[1], [1], [0], [0], [0, 0, 1, 0], [], []>} : vector<4x128xbf16>, vector<4x128xbf16>, vector<4x4xf32> -> vector<4x4xf32>
    %c0_43 = arith.constant 0 : index
    %c0_44 = arith.constant 0 : index
    %c0_45 = arith.constant 0 : index
    %57 = vector.load %arg17[%c0_43, %c0_44, %c0_45] : memref<1x4x4xf32, #tpu.memory_space<vmem>>, vector<1x4x4xf32>
    %58 = vector.shape_cast %57 : vector<1x4x4xf32> to vector<4x4xf32>
    %59 = arith.addf %58, %56 : vector<4x4xf32>
    %c0_46 = arith.constant 0 : index
    %c0_47 = arith.constant 0 : index
    %c0_48 = arith.constant 0 : index
    %60 = vector.load %arg17[%c0_46, %c0_47, %c0_48] : memref<1x4x4xf32, #tpu.memory_space<vmem>>, vector<1x4x4xf32>
    %61 = vector.shape_cast %60 : vector<1x4x4xf32> to vector<4x4xf32>
    %62 = vector.shape_cast %59 : vector<4x4xf32> to vector<1x4x4xf32>
    tpu.vector_store %arg17[%c0_46, %c0_47, %c0_48], %62 {strides = array<i32>} : memref<1x4x4xf32, #tpu.memory_space<vmem>>, vector<1x4x4xf32>,
    return
  }
  func.func @transform_0(%arg0: i32, %arg1: i32, %arg2: i32) -> (i32, i32, i32) {
    %c1_i32 = arith.constant 1 : i32
    %0 = arith.muli %arg1, %c1_i32 : i32
    %1 = arith.addi %0, %arg2 : i32
    %c0_i32 = arith.constant 0 : i32
    %c0_i32_0 = arith.constant 0 : i32
    return %arg0, %c0_i32, %1 : i32, i32, i32
  }
  func.func @transform_1(%arg0: i32, %arg1: i32, %arg2: i32) -> (i32, i32, i32) {
    %c1_i32 = arith.constant 1 : i32
    %0 = arith.muli %arg1, %c1_i32 : i32
    %1 = arith.addi %0, %arg2 : i32
    %c0_i32 = arith.constant 0 : i32
    %c0_i32_0 = arith.constant 0 : i32
    return %arg0, %c0_i32, %1 : i32, i32, i32
  }
  func.func @transform_2(%arg0: i32, %arg1: i32, %arg2: i32) -> (i32, i32) {
    %c0_i32 = arith.constant 0 : i32
    %c0_i32_0 = arith.constant 0 : i32
    %c0_i32_1 = arith.constant 0 : i32
    return %c0_i32, %c0_i32_0 : i32, i32
  }
  func.func @transform_3(%arg0: i32, %arg1: i32, %arg2: i32) -> (i32, i32) {
    %c0_i32 = arith.constant 0 : i32
    %c0_i32_0 = arith.constant 0 : i32
    %c0_i32_1 = arith.constant 0 : i32
    return %c0_i32, %c0_i32_0 : i32, i32
  }
  func.func @transform_4(%arg0: i32, %arg1: i32, %arg2: i32) -> (i32, i32) {
    %c0_i32 = arith.constant 0 : i32
    %c0_i32_0 = arith.constant 0 : i32
    %c0_i32_1 = arith.constant 0 : i32
    return %c0_i32, %c0_i32_0 : i32, i32
  }
  func.func @transform_5(%arg0: i32, %arg1: i32, %arg2: i32) -> (i32, i32) {
    %c0_i32 = arith.constant 0 : i32
    %c0_i32_0 = arith.constant 0 : i32
    %c0_i32_1 = arith.constant 0 : i32
    return %c0_i32, %c0_i32_0 : i32, i32
  }
  func.func @transform_6(%arg0: i32, %arg1: i32, %arg2: i32) -> (i32, i32) {
    %c0_i32 = arith.constant 0 : i32
    %c0_i32_0 = arith.constant 0 : i32
    %c0_i32_1 = arith.constant 0 : i32
    return %c0_i32, %c0_i32_0 : i32, i32
  }
  func.func @transform_7(%arg0: i32, %arg1: i32, %arg2: i32) -> (i32, i32) {
    %c0_i32 = arith.constant 0 : i32
    %c0_i32_0 = arith.constant 0 : i32
    %c0_i32_1 = arith.constant 0 : i32
    return %c0_i32, %c0_i32_0 : i32, i32
  }
  func.func @transform_8(%arg0: i32, %arg1: i32, %arg2: i32) -> (i32, i32) {
    %c0_i32 = arith.constant 0 : i32
    %c0_i32_0 = arith.constant 0 : i32
    %c0_i32_1 = arith.constant 0 : i32
    return %c0_i32, %c0_i32_0 : i32, i32
  }
  func.func @transform_9(%arg0: i32, %arg1: i32, %arg2: i32) -> (i32, i32) {
    %c0_i32 = arith.constant 0 : i32
    %c0_i32_0 = arith.constant 0 : i32
    %c0_i32_1 = arith.constant 0 : i32
    return %c0_i32, %c0_i32_0 : i32, i32
  }
  func.func @transform_10(%arg0: i32, %arg1: i32, %arg2: i32) -> (i32, i32) {
    %c0_i32 = arith.constant 0 : i32
    %c0_i32_0 = arith.constant 0 : i32
    %c0_i32_1 = arith.constant 0 : i32
    return %c0_i32, %c0_i32_0 : i32, i32
  }
  func.func @transform_11(%arg0: i32, %arg1: i32, %arg2: i32) -> (i32, i32) {
    %c0_i32 = arith.constant 0 : i32
    %c0_i32_0 = arith.constant 0 : i32
    %c0_i32_1 = arith.constant 0 : i32
    return %c0_i32, %c0_i32_0 : i32, i32
  }
  func.func @transform_12(%arg0: i32, %arg1: i32, %arg2: i32) -> (i32, i32) {
    %c0_i32 = arith.constant 0 : i32
    %c0_i32_0 = arith.constant 0 : i32
    %c0_i32_1 = arith.constant 0 : i32
    return %c0_i32, %c0_i32_0 : i32, i32
  }
  func.func @transform_13(%arg0: i32, %arg1: i32, %arg2: i32) -> (i32, i32) {
    %c0_i32 = arith.constant 0 : i32
    %c0_i32_0 = arith.constant 0 : i32
    %c0_i32_1 = arith.constant 0 : i32
    return %c0_i32, %c0_i32_0 : i32, i32
  }
  func.func @transform_14(%arg0: i32, %arg1: i32, %arg2: i32) -> (i32, i32, i32) {
    %c2_i32 = arith.constant 2 : i32
    %0 = arith.muli %arg0, %c2_i32 : i32
    %1 = arith.addi %0, %arg1 : i32
    %c0_i32 = arith.constant 0 : i32
    %c0_i32_0 = arith.constant 0 : i32
    %c0_i32_1 = arith.constant 0 : i32
    return %1, %c0_i32, %c0_i32_0 : i32, i32, i32
  }
  func.func @transform_15(%arg0: i32, %arg1: i32, %arg2: i32) -> (i32, i32, i32) {
    %c1_i32 = arith.constant 1 : i32
    %0 = arith.muli %arg1, %c1_i32 : i32
    %1 = arith.addi %0, %arg2 : i32
    %c0_i32 = arith.constant 0 : i32
    %c0_i32_0 = arith.constant 0 : i32
    return %arg0, %c0_i32, %1 : i32, i32, i32
  }
}

</mosaic_0001>

<llo_original>
// kernel: tpu_custom_call.1
$region0: #{tpu_custom_call.1}
  #allocation0 [shape = 'u32[]', space=smem, size = 0x4, offset = 0x4, fixed_abs, tag = 'smem constant byte address 0x4 - core index']
  #allocation1 [shape = 'u32[72,128]{1,0:T(1,128)}', space=vmem, size = 0x9000, scoped, tag = 'internal scratch']
  %s0 = inlined_call_operand.vmem [shape: f32[2,3,256], index: 0, kind: input, shape index: {}]
  %s1 = inlined_call_operand.vmem [shape: bf16[2,4,256], index: 1, kind: input, shape index: {}]
  %s2 = inlined_call_operand.vmem [shape: f32[128,3], index: 2, kind: input, shape index: {}]
  %s3 = inlined_call_operand.vmem [shape: f32[128,1], index: 3, kind: input, shape index: {}]
  %s4 = inlined_call_operand.vmem [shape: bf16[256,128], index: 4, kind: input, shape index: {}]
  %s5 = inlined_call_operand.vmem [shape: f32[256,1], index: 5, kind: input, shape index: {}]
  %s6 = inlined_call_operand.vmem [shape: bf16[256,128], index: 6, kind: input, shape index: {}]
  %s7 = inlined_call_operand.vmem [shape: f32[256,1], index: 7, kind: input, shape index: {}]
  %s8 = inlined_call_operand.vmem [shape: bf16[4,256], index: 8, kind: input, shape index: {}]
  %s9 = inlined_call_operand.vmem [shape: f32[4,1], index: 9, kind: input, shape index: {}]
  %s10 = inlined_call_operand.vmem [shape: bf16[256,128], index: 10, kind: input, shape index: {}]
  %s11 = inlined_call_operand.vmem [shape: f32[256,1], index: 11, kind: input, shape index: {}]
  %s12 = inlined_call_operand.vmem [shape: bf16[4,256], index: 12, kind: input, shape index: {}]
  %s13 = inlined_call_operand.vmem [shape: f32[4,1], index: 13, kind: input, shape index: {}]
  %s14 = inlined_call_operand.hbm [shape: f32[4,4,4], index: 14, kind: output, shape index: {0}]
  %s15 = inlined_call_operand.hbm [shape: bf16[2,4,256], index: 15, kind: output, shape index: {1}]
  %16 = xla_tuple %s14, %s15
  %s17 = sld [smem:[#allocation0]]
  $region101: #{tpu_custom_call.1} parent=0
    _
  %s19 = ssub.s32 1, %s17
  %s20 = scalar_select 0, %s19, %s17
  $region1: #{tpu_custom_call.1} parent=0
    #allocation2 [shape = 'u8[4096]{0}', space=vmem, size = 0x1000, scoped, tag = 'output window, operand 0']
    #allocation3 [shape = 's32[2]{0}', space=sflag, size = 0x8, scoped, tag = 'scoped memory for tpu_custom_call.1']
    #allocation4 [shape = 'u8[2048]{0}', space=vmem, size = 0x800, scoped, tag = 'output window, operand 1']
    #allocation5 [shape = 's32[2]{0}', space=sflag, size = 0x8, scoped, tag = 'scoped memory for tpu_custom_call.1']
    %21 = vsyncpa [#allocation3], 0
    %s22 = scalar_lea.sflag [#allocation3], 1
    %23 = vsyncpa %s22, 0
    %24 = vsyncpa [#allocation5], 0
    %s25 = scalar_lea.sflag [#allocation5], 1
    %26 = vsyncpa %s25, 0
    loop: start=0, step=1, limit=6
    $region2: #{tpu_custom_call.1} parent=1 // loop_pre_header
      _
    $region3: #{tpu_custom_call.1} parent=1 // loop_header
      %s28 = sphi 0, %s32
      %p29 = scmp.ge.s32.totalorder %s28, 6
      %s35 = sphi 0, %s54
      %s36 = sphi 0, %s50
      %s37 = sphi 0, %s46
      %s38 = sphi 0, %s35
      %s39 = sphi 0, %s36
      %s40 = sphi 0, %s37
      %s41 = sphi 0, %s38
      %s42 = sphi 0, %s39
      %s43 = sphi 0, %s40
      %s61 = sphi 0, %s63
      %s64 = sphi 0, %s61
      %s65 = sphi 0, %s64
      %s81 = sphi 0, %s65
      %s91 = sphi 0, %s93
      %s94 = sphi 0, %s91
      %s95 = sphi 0, %s94
      %s111 = sphi 0, %s95
      %s115 = sphi 0, %s115
      %s117 = sphi 0, %s115
      %s118 = sphi 0, %s117
      %s132 = sphi 0, %s118
      %s136 = sphi 0, %s136
      %s138 = sphi 0, %s136
      %s139 = sphi 0, %s138
      %s153 = sphi 0, %s139
      %s157 = sphi 0, %s157
      %s159 = sphi 0, %s157
      %s160 = sphi 0, %s159
      %s174 = sphi 0, %s160
      %s178 = sphi 0, %s178
      %s180 = sphi 0, %s178
      %s181 = sphi 0, %s180
      %s195 = sphi 0, %s181
      %s199 = sphi 0, %s199
      %s201 = sphi 0, %s199
      %s202 = sphi 0, %s201
      %s216 = sphi 0, %s202
      %s220 = sphi 0, %s220
      %s222 = sphi 0, %s220
      %s223 = sphi 0, %s222
      %s237 = sphi 0, %s223
      %s241 = sphi 0, %s241
      %s243 = sphi 0, %s241
      %s244 = sphi 0, %s243
      %s258 = sphi 0, %s244
      %s262 = sphi 0, %s262
      %s264 = sphi 0, %s262
      %s265 = sphi 0, %s264
      %s279 = sphi 0, %s265
      %s283 = sphi 0, %s283
      %s285 = sphi 0, %s283
      %s286 = sphi 0, %s285
      %s300 = sphi 0, %s286
      %s304 = sphi 0, %s304
      %s306 = sphi 0, %s304
      %s307 = sphi 0, %s306
      %s321 = sphi 0, %s307
      %s325 = sphi 0, %s325
      %s327 = sphi 0, %s325
      %s328 = sphi 0, %s327
      %s342 = sphi 0, %s328
      %s346 = sphi 0, %s346
      %s348 = sphi 0, %s346
      %s349 = sphi 0, %s348
      %s363 = sphi 0, %s349
      %s373 = sphi 0, %s375
      %s376 = sphi 0, %s373
      %s377 = sphi 0, %s376
      %s393 = sphi 0, %s377
      %s403 = sphi 0, %s405
      %s406 = sphi 0, %s403
      %s407 = sphi 0, %s406
      %s423 = sphi 0, %s407
    $region4: #{tpu_custom_call.1} parent=1 // loop_header_branch
      %31 = sbr.rel (%p29) target = $region8
    $region5: #{tpu_custom_call.1} parent=1 // loop_body
      %s33 = ssub.s32 %s28, 1
      %s34 = ssub.s32 %s28, 2
      %s44 = sadd.s32 1, %s37
      %p45 = scmp.ge.s32.totalorder %s44, 1
      %s46 = scalar_select %p45, 0, %s44
      %s47 = sadd.s32 1, %s36
      %s48 = scalar_select %p45, %s47, %s36
      %p49 = scmp.ge.s32.totalorder %s48, 2
      %s50 = scalar_select %p49, 0, %s48
      %s51 = sadd.s32 1, %s35
      %s52 = scalar_select %p49, %s51, %s35
      %p53 = scmp.ge.s32.totalorder %s52, 2
      %s54 = scalar_select %p53, 0, %s52
      %s55 = sadd.s32 %s36, %s37
      %s56 = sadd.s32 %s50, %s46
      %s57 = ssub.s32 %s35, %s54
      %s58 = ssub.s32 %s55, %s56
      %s59 = sor.u32 %s57, %s58
      %p60 = scmp.eq.s32.totalorder %s59, 0
      %s62 = sadd.s32 %s61, 1
      %s63 = scalar_select %p60, %s61, %s62
      %p66 = pneg %p60
      %p67 = scmp.eq.s32.totalorder %s28, 3
      %p68 = por %p66, %p67
      %p69 = scmp.ne.s32.totalorder %s61, %s64
      %p70 = scmp.eq.s32.totalorder %s28, 0
      %p71 = por %p69, %p70
      %p72 = scmp.ne.s32.totalorder %s61, %s64
      %p73 = scmp.eq.s32.totalorder %s33, 3
      %p74 = por %p72, %p73
      %p75 = scmp.ne.s32.totalorder %s64, %s65
      %p76 = scmp.eq.s32.totalorder %s33, 0
      %p77 = por %p75, %p76
      %p78 = scmp.ne.s32.totalorder %s64, %s65
      %p79 = scmp.eq.s32.totalorder %s34, 3
      %p80 = por %p78, %p79
      %p82 = scmp.ne.s32.totalorder %s65, %s81
      %p83 = scmp.eq.s32.totalorder %s34, 0
      %p84 = por %p82, %p83
      %s85 = sadd.s32 %s36, %s37
      %s86 = sadd.s32 %s50, %s46
      %s87 = ssub.s32 %s35, %s54
      %s88 = ssub.s32 %s85, %s86
      %s89 = sor.u32 %s87, %s88
      %p90 = scmp.eq.s32.totalorder %s89, 0
      %s92 = sadd.s32 %s91, 1
      %s93 = scalar_select %p90, %s91, %s92
      %p96 = pneg %p90
      %p97 = scmp.eq.s32.totalorder %s28, 3
      %p98 = por %p96, %p97
      %p99 = scmp.ne.s32.totalorder %s91, %s94
      %p100 = scmp.eq.s32.totalorder %s28, 0
      %p101 = por %p99, %p100
      %p102 = scmp.ne.s32.totalorder %s91, %s94
      %p103 = scmp.eq.s32.totalorder %s33, 3
      %p104 = por %p102, %p103
      %p105 = scmp.ne.s32.totalorder %s94, %s95
      %p106 = scmp.eq.s32.totalorder %s33, 0
      %p107 = por %p105, %p106
      %p108 = scmp.ne.s32.totalorder %s94, %s95
      %p109 = scmp.eq.s32.totalorder %s34, 3
      %p110 = por %p108, %p109
      %p112 = scmp.ne.s32.totalorder %s95, %s111
      %p113 = scmp.eq.s32.totalorder %s34, 0
      %p114 = por %p112, %p113
      %s116 = sadd.s32 %s115, 1
      %p119 = scmp.eq.s32.totalorder %s28, 3
      %p120 = scmp.ne.s32.totalorder %s115, %s117
      %p121 = scmp.eq.s32.totalorder %s28, 0
      %p122 = por %p120, %p121
      %p123 = scmp.ne.s32.totalorder %s115, %s117
      %p124 = scmp.eq.s32.totalorder %s33, 3
      %p125 = por %p123, %p124
      %p126 = scmp.ne.s32.totalorder %s117, %s118
      %p127 = scmp.eq.s32.totalorder %s33, 0
      %p128 = por %p126, %p127
      %p129 = scmp.ne.s32.totalorder %s117, %s118
      %p130 = scmp.eq.s32.totalorder %s34, 3
      %p131 = por %p129, %p130
      %p133 = scmp.ne.s32.totalorder %s118, %s132
      %p134 = scmp.eq.s32.totalorder %s34, 0
      %p135 = por %p133, %p134
      %s137 = sadd.s32 %s136, 1
      %p140 = scmp.eq.s32.totalorder %s28, 3
      %p141 = scmp.ne.s32.totalorder %s136, %s138
      %p142 = scmp.eq.s32.totalorder %s28, 0
      %p143 = por %p141, %p142
      %p144 = scmp.ne.s32.totalorder %s136, %s138
      %p145 = scmp.eq.s32.totalorder %s33, 3
      %p146 = por %p144, %p145
      %p147 = scmp.ne.s32.totalorder %s138, %s139
      %p148 = scmp.eq.s32.totalorder %s33, 0
      %p149 = por %p147, %p148
      %p150 = scmp.ne.s32.totalorder %s138, %s139
      %p151 = scmp.eq.s32.totalorder %s34, 3
      %p152 = por %p150, %p151
      %p154 = scmp.ne.s32.totalorder %s139, %s153
      %p155 = scmp.eq.s32.totalorder %s34, 0
      %p156 = por %p154, %p155
      %s158 = sadd.s32 %s157, 1
      %p161 = scmp.eq.s32.totalorder %s28, 3
      %p162 = scmp.ne.s32.totalorder %s157, %s159
      %p163 = scmp.eq.s32.totalorder %s28, 0
      %p164 = por %p162, %p163
      %p165 = scmp.ne.s32.totalorder %s157, %s159
      %p166 = scmp.eq.s32.totalorder %s33, 3
      %p167 = por %p165, %p166
      %p168 = scmp.ne.s32.totalorder %s159, %s160
      %p169 = scmp.eq.s32.totalorder %s33, 0
      %p170 = por %p168, %p169
      %p171 = scmp.ne.s32.totalorder %s159, %s160
      %p172 = scmp.eq.s32.totalorder %s34, 3
      %p173 = por %p171, %p172
      %p175 = scmp.ne.s32.totalorder %s160, %s174
      %p176 = scmp.eq.s32.totalorder %s34, 0
      %p177 = por %p175, %p176
      %s179 = sadd.s32 %s178, 1
      %p182 = scmp.eq.s32.totalorder %s28, 3
      %p183 = scmp.ne.s32.totalorder %s178, %s180
      %p184 = scmp.eq.s32.totalorder %s28, 0
      %p185 = por %p183, %p184
      %p186 = scmp.ne.s32.totalorder %s178, %s180
      %p187 = scmp.eq.s32.totalorder %s33, 3
      %p188 = por %p186, %p187
      %p189 = scmp.ne.s32.totalorder %s180, %s181
      %p190 = scmp.eq.s32.totalorder %s33, 0
      %p191 = por %p189, %p190
      %p192 = scmp.ne.s32.totalorder %s180, %s181
      %p193 = scmp.eq.s32.totalorder %s34, 3
      %p194 = por %p192, %p193
      %p196 = scmp.ne.s32.totalorder %s181, %s195
      %p197 = scmp.eq.s32.totalorder %s34, 0
      %p198 = por %p196, %p197
      %s200 = sadd.s32 %s199, 1
      %p203 = scmp.eq.s32.totalorder %s28, 3
      %p204 = scmp.ne.s32.totalorder %s199, %s201
      %p205 = scmp.eq.s32.totalorder %s28, 0
      %p206 = por %p204, %p205
      %p207 = scmp.ne.s32.totalorder %s199, %s201
      %p208 = scmp.eq.s32.totalorder %s33, 3
      %p209 = por %p207, %p208
      %p210 = scmp.ne.s32.totalorder %s201, %s202
      %p211 = scmp.eq.s32.totalorder %s33, 0
      %p212 = por %p210, %p211
      %p213 = scmp.ne.s32.totalorder %s201, %s202
      %p214 = scmp.eq.s32.totalorder %s34, 3
      %p215 = por %p213, %p214
      %p217 = scmp.ne.s32.totalorder %s202, %s216
      %p218 = scmp.eq.s32.totalorder %s34, 0
      %p219 = por %p217, %p218
      %s221 = sadd.s32 %s220, 1
      %p224 = scmp.eq.s32.totalorder %s28, 3
      %p225 = scmp.ne.s32.totalorder %s220, %s222
      %p226 = scmp.eq.s32.totalorder %s28, 0
      %p227 = por %p225, %p226
      %p228 = scmp.ne.s32.totalorder %s220, %s222
      %p229 = scmp.eq.s32.totalorder %s33, 3
      %p230 = por %p228, %p229
      %p231 = scmp.ne.s32.totalorder %s222, %s223
      %p232 = scmp.eq.s32.totalorder %s33, 0
      %p233 = por %p231, %p232
      %p234 = scmp.ne.s32.totalorder %s222, %s223
      %p235 = scmp.eq.s32.totalorder %s34, 3
      %p236 = por %p234, %p235
      %p238 = scmp.ne.s32.totalorder %s223, %s237
      %p239 = scmp.eq.s32.totalorder %s34, 0
      %p240 = por %p238, %p239
      %s242 = sadd.s32 %s241, 1
      %p245 = scmp.eq.s32.totalorder %s28, 3
      %p246 = scmp.ne.s32.totalorder %s241, %s243
      %p247 = scmp.eq.s32.totalorder %s28, 0
      %p248 = por %p246, %p247
      %p249 = scmp.ne.s32.totalorder %s241, %s243
      %p250 = scmp.eq.s32.totalorder %s33, 3
      %p251 = por %p249, %p250
      %p252 = scmp.ne.s32.totalorder %s243, %s244
      %p253 = scmp.eq.s32.totalorder %s33, 0
      %p254 = por %p252, %p253
      %p255 = scmp.ne.s32.totalorder %s243, %s244
      %p256 = scmp.eq.s32.totalorder %s34, 3
      %p257 = por %p255, %p256
      %p259 = scmp.ne.s32.totalorder %s244, %s258
      %p260 = scmp.eq.s32.totalorder %s34, 0
      %p261 = por %p259, %p260
      %s263 = sadd.s32 %s262, 1
      %p266 = scmp.eq.s32.totalorder %s28, 3
      %p267 = scmp.ne.s32.totalorder %s262, %s264
      %p268 = scmp.eq.s32.totalorder %s28, 0
      %p269 = por %p267, %p268
      %p270 = scmp.ne.s32.totalorder %s262, %s264
      %p271 = scmp.eq.s32.totalorder %s33, 3
      %p272 = por %p270, %p271
      %p273 = scmp.ne.s32.totalorder %s264, %s265
      %p274 = scmp.eq.s32.totalorder %s33, 0
      %p275 = por %p273, %p274
      %p276 = scmp.ne.s32.totalorder %s264, %s265
      %p277 = scmp.eq.s32.totalorder %s34, 3
      %p278 = por %p276, %p277
      %p280 = scmp.ne.s32.totalorder %s265, %s279
      %p281 = scmp.eq.s32.totalorder %s34, 0
      %p282 = por %p280, %p281
      %s284 = sadd.s32 %s283, 1
      %p287 = scmp.eq.s32.totalorder %s28, 3
      %p288 = scmp.ne.s32.totalorder %s283, %s285
      %p289 = scmp.eq.s32.totalorder %s28, 0
      %p290 = por %p288, %p289
      %p291 = scmp.ne.s32.totalorder %s283, %s285
      %p292 = scmp.eq.s32.totalorder %s33, 3
      %p293 = por %p291, %p292
      %p294 = scmp.ne.s32.totalorder %s285, %s286
      %p295 = scmp.eq.s32.totalorder %s33, 0
      %p296 = por %p294, %p295
      %p297 = scmp.ne.s32.totalorder %s285, %s286
      %p298 = scmp.eq.s32.totalorder %s34, 3
      %p299 = por %p297, %p298
      %p301 = scmp.ne.s32.totalorder %s286, %s300
      %p302 = scmp.eq.s32.totalorder %s34, 0
      %p303 = por %p301, %p302
      %s305 = sadd.s32 %s304, 1
      %p308 = scmp.eq.s32.totalorder %s28, 3
      %p309 = scmp.ne.s32.totalorder %s304, %s306
      %p310 = scmp.eq.s32.totalorder %s28, 0
      %p311 = por %p309, %p310
      %p312 = scmp.ne.s32.totalorder %s304, %s306
      %p313 = scmp.eq.s32.totalorder %s33, 3
      %p314 = por %p312, %p313
      %p315 = scmp.ne.s32.totalorder %s306, %s307
      %p316 = scmp.eq.s32.totalorder %s33, 0
      %p317 = por %p315, %p316
      %p318 = scmp.ne.s32.totalorder %s306, %s307
      %p319 = scmp.eq.s32.totalorder %s34, 3
      %p320 = por %p318, %p319
      %p322 = scmp.ne.s32.totalorder %s307, %s321
      %p323 = scmp.eq.s32.totalorder %s34, 0
      %p324 = por %p322, %p323
      %s326 = sadd.s32 %s325, 1
      %p329 = scmp.eq.s32.totalorder %s28, 3
      %p330 = scmp.ne.s32.totalorder %s325, %s327
      %p331 = scmp.eq.s32.totalorder %s28, 0
      %p332 = por %p330, %p331
      %p333 = scmp.ne.s32.totalorder %s325, %s327
      %p334 = scmp.eq.s32.totalorder %s33, 3
      %p335 = por %p333, %p334
      %p336 = scmp.ne.s32.totalorder %s327, %s328
      %p337 = scmp.eq.s32.totalorder %s33, 0
      %p338 = por %p336, %p337
      %p339 = scmp.ne.s32.totalorder %s327, %s328
      %p340 = scmp.eq.s32.totalorder %s34, 3
      %p341 = por %p339, %p340
      %p343 = scmp.ne.s32.totalorder %s328, %s342
      %p344 = scmp.eq.s32.totalorder %s34, 0
      %p345 = por %p343, %p344
      %s347 = sadd.s32 %s346, 1
      %p350 = scmp.eq.s32.totalorder %s28, 3
      %p351 = scmp.ne.s32.totalorder %s346, %s348
      %p352 = scmp.eq.s32.totalorder %s28, 0
      %p353 = por %p351, %p352
      %p354 = scmp.ne.s32.totalorder %s346, %s348
      %p355 = scmp.eq.s32.totalorder %s33, 3
      %p356 = por %p354, %p355
      %p357 = scmp.ne.s32.totalorder %s348, %s349
      %p358 = scmp.eq.s32.totalorder %s33, 0
      %p359 = por %p357, %p358
      %p360 = scmp.ne.s32.totalorder %s348, %s349
      %p361 = scmp.eq.s32.totalorder %s34, 3
      %p362 = por %p360, %p361
      %p364 = scmp.ne.s32.totalorder %s349, %s363
      %p365 = scmp.eq.s32.totalorder %s34, 0
      %p366 = por %p364, %p365
      %s367 = smul.u32 %s35, 2
      %s368 = sadd.s32 %s367, %s36
      %s369 = smul.u32 %s54, 2
      %s370 = sadd.s32 %s369, %s50
      %s371 = ssub.s32 %s368, %s370
      %p372 = scmp.eq.s32.totalorder %s371, 0
      %s374 = sadd.s32 %s373, 1
      %s375 = scalar_select %p372, %s373, %s374
      %p378 = pneg %p372
      %p379 = scmp.eq.s32.totalorder %s28, 3
      %p380 = por %p378, %p379
      %p381 = scmp.ne.s32.totalorder %s373, %s376
      %p382 = scmp.eq.s32.totalorder %s28, 0
      %p383 = por %p381, %p382
      %p384 = scmp.ne.s32.totalorder %s373, %s376
      %p385 = scmp.eq.s32.totalorder %s33, 3
      %p386 = por %p384, %p385
      %p387 = scmp.ne.s32.totalorder %s376, %s377
      %p388 = scmp.eq.s32.totalorder %s33, 0
      %p389 = por %p387, %p388
      %p390 = scmp.ne.s32.totalorder %s376, %s377
      %p391 = scmp.eq.s32.totalorder %s34, 3
      %p392 = por %p390, %p391
      %p394 = scmp.ne.s32.totalorder %s377, %s393
      %p395 = scmp.eq.s32.totalorder %s34, 0
      %p396 = por %p394, %p395
      %s397 = sadd.s32 %s36, %s37
      %s398 = sadd.s32 %s50, %s46
      %s399 = ssub.s32 %s35, %s54
      %s400 = ssub.s32 %s397, %s398
      %s401 = sor.u32 %s399, %s400
      %p402 = scmp.eq.s32.totalorder %s401, 0
      %s404 = sadd.s32 %s403, 1
      %s405 = scalar_select %p402, %s403, %s404
      %p408 = pneg %p402
      %p409 = scmp.eq.s32.totalorder %s28, 3
      %p410 = por %p408, %p409
      %p411 = scmp.ne.s32.totalorder %s403, %s406
      %p412 = scmp.eq.s32.totalorder %s28, 0
      %p413 = por %p411, %p412
      %p414 = scmp.ne.s32.totalorder %s403, %s406
      %p415 = scmp.eq.s32.totalorder %s33, 3
      %p416 = por %p414, %p415
      %p417 = scmp.ne.s32.totalorder %s406, %s407
      %p418 = scmp.eq.s32.totalorder %s33, 0
      %p419 = por %p417, %p418
      %p420 = scmp.ne.s32.totalorder %s406, %s407
      %p421 = scmp.eq.s32.totalorder %s34, 3
      %p422 = por %p420, %p421
      %p424 = scmp.ne.s32.totalorder %s407, %s423
      %p425 = scmp.eq.s32.totalorder %s34, 0
      %p426 = por %p424, %p425
      %p427 = scmp.le.s32.totalorder 1, %s28
      %p428 = scmp.lt.s32.totalorder %s28, 5
      %p429 = pnand %p427, %p428
      %p430 = pneg %p429
      // Predicated region
      $region9: #{tpu_custom_call.1} parent=5 // pred_check
        _
      $region10: #{tpu_custom_call.1} parent=5 // pred_check_branch
        %432 = sbr.rel (%p429) target = $region12
      $region11: #{tpu_custom_call.1} parent=5 // pred_region
        %s433 = ssub.s32 %s28, 1
        // Predicated region
        $region13: #{tpu_custom_call.1} parent=11 // pred_check
          %p434 = pneg %p128
        $region14: #{tpu_custom_call.1} parent=11 // pred_check_branch
          %436 = sbr.rel (%p434) target = $region16
        $region15: #{tpu_custom_call.1} parent=11 // pred_region
          _
        $region16: #{tpu_custom_call.1} parent=11 // pred_fallthru
          _
        // Predicated region
        $region17: #{tpu_custom_call.1} parent=11 // pred_check
          %p437 = pneg %p149
        $region18: #{tpu_custom_call.1} parent=11 // pred_check_branch
          %439 = sbr.rel (%p437) target = $region20
        $region19: #{tpu_custom_call.1} parent=11 // pred_region
          _
        $region20: #{tpu_custom_call.1} parent=11 // pred_fallthru
          _
        // Predicated region
        $region21: #{tpu_custom_call.1} parent=11 // pred_check
          %p440 = pneg %p170
        $region22: #{tpu_custom_call.1} parent=11 // pred_check_branch
          %442 = sbr.rel (%p440) target = $region24
        $region23: #{tpu_custom_call.1} parent=11 // pred_region
          _
        $region24: #{tpu_custom_call.1} parent=11 // pred_fallthru
          _
        // Predicated region
        $region25: #{tpu_custom_call.1} parent=11 // pred_check
          %p443 = pneg %p191
        $region26: #{tpu_custom_call.1} parent=11 // pred_check_branch
          %445 = sbr.rel (%p443) target = $region28
        $region27: #{tpu_custom_call.1} parent=11 // pred_region
          _
        $region28: #{tpu_custom_call.1} parent=11 // pred_fallthru
          _
        // Predicated region
        $region29: #{tpu_custom_call.1} parent=11 // pred_check
          %p446 = pneg %p212
        $region30: #{tpu_custom_call.1} parent=11 // pred_check_branch
          %448 = sbr.rel (%p446) target = $region32
        $region31: #{tpu_custom_call.1} parent=11 // pred_region
          _
        $region32: #{tpu_custom_call.1} parent=11 // pred_fallthru
          _
        // Predicated region
        $region33: #{tpu_custom_call.1} parent=11 // pred_check
          %p449 = pneg %p233
        $region34: #{tpu_custom_call.1} parent=11 // pred_check_branch
          %451 = sbr.rel (%p449) target = $region36
        $region35: #{tpu_custom_call.1} parent=11 // pred_region
          _
        $region36: #{tpu_custom_call.1} parent=11 // pred_fallthru
          _
        // Predicated region
        $region37: #{tpu_custom_call.1} parent=11 // pred_check
          %p452 = pneg %p254
        $region38: #{tpu_custom_call.1} parent=11 // pred_check_branch
          %454 = sbr.rel (%p452) target = $region40
        $region39: #{tpu_custom_call.1} parent=11 // pred_region
          _
        $region40: #{tpu_custom_call.1} parent=11 // pred_fallthru
          _
        // Predicated region
        $region41: #{tpu_custom_call.1} parent=11 // pred_check
          %p455 = pneg %p275
        $region42: #{tpu_custom_call.1} parent=11 // pred_check_branch
          %457 = sbr.rel (%p455) target = $region44
        $region43: #{tpu_custom_call.1} parent=11 // pred_region
          _
        $region44: #{tpu_custom_call.1} parent=11 // pred_fallthru
          _
        // Predicated region
        $region45: #{tpu_custom_call.1} parent=11 // pred_check
          %p458 = pneg %p296
        $region46: #{tpu_custom_call.1} parent=11 // pred_check_branch
          %460 = sbr.rel (%p458) target = $region48
        $region47: #{tpu_custom_call.1} parent=11 // pred_region
          _
        $region48: #{tpu_custom_call.1} parent=11 // pred_fallthru
          _
        // Predicated region
        $region49: #{tpu_custom_call.1} parent=11 // pred_check
          %p461 = pneg %p317
        $region50: #{tpu_custom_call.1} parent=11 // pred_check_branch
          %463 = sbr.rel (%p461) target = $region52
        $region51: #{tpu_custom_call.1} parent=11 // pred_region
          _
        $region52: #{tpu_custom_call.1} parent=11 // pred_fallthru
          _
        // Predicated region
        $region53: #{tpu_custom_call.1} parent=11 // pred_check
          %p464 = pneg %p338
        $region54: #{tpu_custom_call.1} parent=11 // pred_check_branch
          %466 = sbr.rel (%p464) target = $region56
        $region55: #{tpu_custom_call.1} parent=11 // pred_region
          _
        $region56: #{tpu_custom_call.1} parent=11 // pred_fallthru
          _
        // Predicated region
        $region57: #{tpu_custom_call.1} parent=11 // pred_check
          %p467 = pneg %p359
        $region58: #{tpu_custom_call.1} parent=11 // pred_check_branch
          %469 = sbr.rel (%p467) target = $region60
        $region59: #{tpu_custom_call.1} parent=11 // pred_region
          _
        $region60: #{tpu_custom_call.1} parent=11 // pred_fallthru
          _
      $region12: #{tpu_custom_call.1} parent=5 // pred_fallthru
        _
      %p470 = scmp.lt.s32.totalorder %s28, 4
      // Predicated region
      $region61: #{tpu_custom_call.1} parent=5 // pred_check
        %p471 = pneg %p470
      $region62: #{tpu_custom_call.1} parent=5 // pred_check_branch
        %473 = sbr.rel (%p471) target = $region64
      $region63: #{tpu_custom_call.1} parent=5 // pred_region
        // Predicated region
        $region65: #{tpu_custom_call.1} parent=63 // pred_check
          %p474 = pneg %p71
        $region66: #{tpu_custom_call.1} parent=63 // pred_check_branch
          %476 = sbr.rel (%p474) target = $region68
        $region67: #{tpu_custom_call.1} parent=63 // pred_region
          %s477 = sadd.s32 %s36, %s37
          %p478 = scmp.lt.s32.totalorder %s35, 1
          %s479 = scalar_select %p478, %s35, 1
          %p480 = scmp.lt.s32.totalorder %s477, 1
          %s481 = scalar_select %p480, %s477, 1
          %s482 = smul.addr %s479, 2
          %s483 = sadd.s32 %s481, %s482
          %s484 = smul.addr %s483, 4
          %s485 = scalar_lea.vmem %s0, %s484
          %s486 = sadd.s32 %s36, %s37
        $region68: #{tpu_custom_call.1} parent=63 // pred_fallthru
          _
        // Predicated region
        $region69: #{tpu_custom_call.1} parent=63 // pred_check
          %p487 = pneg %p101
        $region70: #{tpu_custom_call.1} parent=63 // pred_check_branch
          %489 = sbr.rel (%p487) target = $region72
        $region71: #{tpu_custom_call.1} parent=63 // pred_region
          %s490 = sadd.s32 %s36, %s37
          %p491 = scmp.lt.s32.totalorder %s35, 1
          %s492 = scalar_select %p491, %s35, 1
          %p493 = scmp.lt.s32.totalorder %s490, 1
          %s494 = scalar_select %p493, %s490, 1
          %s495 = smul.addr %s492, 2
          %s496 = sadd.s32 %s494, %s495
          %s497 = smul.addr %s496, 2
          %s498 = scalar_lea.vmem %s1, %s497
          %s499 = sadd.s32 %s36, %s37
        $region72: #{tpu_custom_call.1} parent=63 // pred_fallthru
          _
      $region64: #{tpu_custom_call.1} parent=5 // pred_fallthru
        _
      %p500 = scmp.le.s32.totalorder 1, %s28
      %p501 = scmp.lt.s32.totalorder %s28, 5
      %p502 = pnand %p500, %p501
      %p503 = pneg %p502
      // Predicated region
      $region73: #{tpu_custom_call.1} parent=5 // pred_check
        _
      $region74: #{tpu_custom_call.1} parent=5 // pred_check_branch
        %505 = sbr.rel (%p502) target = $region76
      $region75: #{tpu_custom_call.1} parent=5 // pred_region
        %s506 = ssub.s32 %s28, 1
        %s507 = sadd.s32 %s39, %s40
        %p508 = scmp.lt.s32.totalorder %s38, 1
        %s509 = scalar_select %p508, %s38, 1
        %p510 = scmp.lt.s32.totalorder %s507, 1
        %s511 = scalar_select %p510, %s507, 1
        %s512 = smul.addr %s509, 2
        %s513 = sadd.s32 %s511, %s512
        %s514 = smul.addr %s513, 4
        %s515 = scalar_lea.vmem %s0, %s514
        %p516 = pneg %p77
        %p517 = pneg %p74
        %s518 = sadd.s32 %s39, %s40
        %p519 = scmp.lt.s32.totalorder %s38, 1
        %s520 = scalar_select %p519, %s38, 1
        %p521 = scmp.lt.s32.totalorder %s518, 1
        %s522 = scalar_select %p521, %s518, 1
        %s523 = smul.addr %s520, 2
        %s524 = sadd.s32 %s522, %s523
        %s525 = smul.addr %s524, 2
        %s526 = scalar_lea.vmem %s1, %s525
        %p527 = pneg %p107
        %p528 = pneg %p104
        %p529 = pneg %p128
        %p530 = pneg %p125
        %p531 = pneg %p149
        %p532 = pneg %p146
        %p533 = pneg %p170
        %p534 = pneg %p167
        %p535 = pneg %p191
        %p536 = pneg %p188
        %p537 = pneg %p212
        %p538 = pneg %p209
        %p539 = pneg %p233
        %p540 = pneg %p230
        %p541 = pneg %p254
        %p542 = pneg %p251
        %p543 = pneg %p275
        %p544 = pneg %p272
        %p545 = pneg %p296
        %p546 = pneg %p293
        %p547 = pneg %p317
        %p548 = pneg %p314
        %p549 = pneg %p338
        %p550 = pneg %p335
        %p551 = pneg %p359
        %p552 = pneg %p356
        %p553 = pneg %p389
        %p554 = pneg %p386
        %s555 = sand.u32 %s376, 1
        %s556 = scalar_lea.sflag [#allocation3], %s555
        %s557 = sand.u32 %s376, 1
        %s558 = smul.addr %s557, 4
        %s559 = scalar_lea.vmem [#allocation2], %s558
        %p560 = pneg %p419
        %p561 = pneg %p416
        %s562 = sand.u32 %s406, 1
        %s563 = scalar_lea.sflag [#allocation5], %s562
        %s564 = sand.u32 %s406, 1
        %s565 = smul.addr %s564, 2
        %s566 = scalar_lea.vmem [#allocation4], %s565
        %s567 = sadd.s32 %s39, %s40
        %p568 = scmp.lt.s32.totalorder %s38, 1
        %s569 = scalar_select %p568, %s38, 1
        %p570 = scmp.lt.s32.totalorder %s567, 1
        %s571 = scalar_select %p570, %s567, 1
        %s572 = smul.addr %s569, 2
        %s573 = sadd.s32 %s571, %s572
        %s574 = smul.addr %s573, 4
        %s575 = scalar_lea.vmem %s0, %s574
        %s576 = sadd.s32 %s39, %s40
        %s577 = sadd.s32 %s39, %s40
        %p578 = scmp.lt.s32.totalorder %s38, 1
        %s579 = scalar_select %p578, %s38, 1
        %p580 = scmp.lt.s32.totalorder %s577, 1
        %s581 = scalar_select %p580, %s577, 1
        %s582 = smul.addr %s579, 2
        %s583 = sadd.s32 %s581, %s582
        %s584 = smul.addr %s583, 2
        %s585 = scalar_lea.vmem %s1, %s584
        %s586 = sadd.s32 %s39, %s40
        %s587 = smul.u32 %s38, 2
        %s588 = sadd.s32 %s587, %s39
        %s589 = sadd.s32 %s39, %s40
        %p591 = scmp.eq.s32.totalorder %s40, 0
        // Predicated region
        $region77: #{tpu_custom_call.1} parent=75 // pred_check
          %p592 = pneg %p591
        $region78: #{tpu_custom_call.1} parent=75 // pred_check_branch
          %594 = sbr.rel (%p592) target = $region80
        $region79: #{tpu_custom_call.1} parent=75 // pred_region
          %vm595 = vcmask 27648
          %596 = vst.msk [vmem:[%s559] sm:$0xf] %vm595, 0.0
        $region80: #{tpu_custom_call.1} parent=75 // pred_fallthru
          _
        %v597 = vld [vmem:[%s575] sm:$0x7]
        %v598 = vld [vmem:[%s2] sm:$0xff]
        %v599 = vld [vmem:[%s2 + $0x8] sm:$0xff]
        %v600 = vld [vmem:[%s2 + $0x10] sm:$0xff]
        %v601 = vld [vmem:[%s2 + $0x18] sm:$0xff]
        %v602 = vld [vmem:[%s2 + $0x20] sm:$0xff]
        %v603 = vld [vmem:[%s2 + $0x28] sm:$0xff]
        %v604 = vld [vmem:[%s2 + $0x30] sm:$0xff]
        %v605 = vld [vmem:[%s2 + $0x38] sm:$0xff]
        %v606 = vld [vmem:[%s2 + $0x40] sm:$0xff]
        %v607 = vld [vmem:[%s2 + $0x48] sm:$0xff]
        %v608 = vld [vmem:[%s2 + $0x50] sm:$0xff]
        %v609 = vld [vmem:[%s2 + $0x58] sm:$0xff]
        %v610 = vld [vmem:[%s2 + $0x60] sm:$0xff]
        %v611 = vld [vmem:[%s2 + $0x68] sm:$0xff]
        %v612 = vld [vmem:[%s2 + $0x70] sm:$0xff]
        %v613 = vld [vmem:[%s2 + $0x78] sm:$0xff]
        %v614 = vld [vmem:[%s3] sm:$0xff]
        %v615 = vld [vmem:[%s3 + $0x8] sm:$0xff]
        %v616 = vld [vmem:[%s3 + $0x10] sm:$0xff]
        %v617 = vld [vmem:[%s3 + $0x18] sm:$0xff]
        %v618 = vld [vmem:[%s3 + $0x20] sm:$0xff]
        %v619 = vld [vmem:[%s3 + $0x28] sm:$0xff]
        %v620 = vld [vmem:[%s3 + $0x30] sm:$0xff]
        %v621 = vld [vmem:[%s3 + $0x38] sm:$0xff]
        %v622 = vld [vmem:[%s3 + $0x40] sm:$0xff]
        %v623 = vld [vmem:[%s3 + $0x48] sm:$0xff]
        %v624 = vld [vmem:[%s3 + $0x50] sm:$0xff]
        %v625 = vld [vmem:[%s3 + $0x58] sm:$0xff]
        %v626 = vld [vmem:[%s3 + $0x60] sm:$0xff]
        %v627 = vld [vmem:[%s3 + $0x68] sm:$0xff]
        %v628 = vld [vmem:[%s3 + $0x70] sm:$0xff]
        %v629 = vld [vmem:[%s3 + $0x78] sm:$0xff]
        %631 = vset.pattern.permute.xlu0 0
        %632 = vperm.xlu0 %631, %v614
        %v633 = vpop.permute.xlu0 %632
        %636 = vset.pattern.permute.xlu0 0
        %637 = vperm.xlu0 %636, %v615
        %v638 = vpop.permute.xlu0 %637
        %641 = vset.pattern.permute.xlu0 0
        %642 = vperm.xlu0 %641, %v616
        %v643 = vpop.permute.xlu0 %642
        %646 = vset.pattern.permute.xlu0 0
        %647 = vperm.xlu0 %646, %v617
        %v648 = vpop.permute.xlu0 %647
        %651 = vset.pattern.permute.xlu0 0
        %652 = vperm.xlu0 %651, %v618
        %v653 = vpop.permute.xlu0 %652
        %656 = vset.pattern.permute.xlu0 0
        %657 = vperm.xlu0 %656, %v619
        %v658 = vpop.permute.xlu0 %657
        %661 = vset.pattern.permute.xlu0 0
        %662 = vperm.xlu0 %661, %v620
        %v663 = vpop.permute.xlu0 %662
        %666 = vset.pattern.permute.xlu0 0
        %667 = vperm.xlu0 %666, %v621
        %v668 = vpop.permute.xlu0 %667
        %671 = vset.pattern.permute.xlu0 0
        %672 = vperm.xlu0 %671, %v622
        %v673 = vpop.permute.xlu0 %672
        %676 = vset.pattern.permute.xlu0 0
        %677 = vperm.xlu0 %676, %v623
        %v678 = vpop.permute.xlu0 %677
        %681 = vset.pattern.permute.xlu0 0
        %682 = vperm.xlu0 %681, %v624
        %v683 = vpop.permute.xlu0 %682
        %686 = vset.pattern.permute.xlu0 0
        %687 = vperm.xlu0 %686, %v625
        %v688 = vpop.permute.xlu0 %687
        %691 = vset.pattern.permute.xlu0 0
        %692 = vperm.xlu0 %691, %v626
        %v693 = vpop.permute.xlu0 %692
        %696 = vset.pattern.permute.xlu0 0
        %697 = vperm.xlu0 %696, %v627
        %v698 = vpop.permute.xlu0 %697
        %701 = vset.pattern.permute.xlu0 0
        %702 = vperm.xlu0 %701, %v628
        %v703 = vpop.permute.xlu0 %702
        %706 = vset.pattern.permute.xlu0 0
        %707 = vperm.xlu0 %706, %v629
        %v708 = vpop.permute.xlu0 %707
        %vm710 = vcmask 23552
        %v712 = vsel %vm710, %v598, 0
        %v715 = vsel %vm710, %v599, 0
        %v718 = vsel %vm710, %v600, 0
        %v721 = vsel %vm710, %v601, 0
        %v724 = vsel %vm710, %v602, 0
        %v727 = vsel %vm710, %v603, 0
        %v730 = vsel %vm710, %v604, 0
        %v733 = vsel %vm710, %v605, 0
        %v736 = vsel %vm710, %v606, 0
        %v739 = vsel %vm710, %v607, 0
        %v742 = vsel %vm710, %v608, 0
        %v745 = vsel %vm710, %v609, 0
        %v748 = vsel %vm710, %v610, 0
        %v751 = vsel %vm710, %v611, 0
        %v754 = vsel %vm710, %v612, 0
        %v757 = vsel %vm710, %v613, 0
        %vm759 = vcmask 1042432
        %v761 = vsel %vm759, %v597, 0
        %763 = vmatpush.msra.mxu0 0.0
        %764 = vmatpush.msra.mxu0 0.0
        %765 = vmatpush.msra.mxu0 0.0
        %766 = vmatpush.msra.mxu0 0.0
        %767 = vmatpush.msra.mxu0 0.0
        %768 = vmatpush.msra.mxu0 0.0
        %769 = vmatpush.msra.mxu0 0.0
        %770 = vmatpush.msra.mxu0 0.0
        %771 = vmatpush.msra.mxu0 0.0
        %772 = vmatpush.msra.mxu0 0.0
        %773 = vmatpush.msra.mxu0 0.0
        %774 = vmatpush.msra.mxu0 0.0
        %775 = vmatpush.msra.mxu0 0.0
        %776 = vmatpush.msra.mxu0 0.0
        %777 = vmatpush.msra.mxu0 0.0
        %778 = vmatpush.msra.mxu0 %v761
        %779 = vmatmul.f32.gmra.mxu0 %v712
        %v780 = vpop.f32.mrf.mxu0
        %v781 = vadd.f32 %v633, %v780
        %782 = vmatmul.f32.gmra.mxu0 %v715
        %v783 = vpop.f32.mrf.mxu0
        %v784 = vadd.f32 %v638, %v783
        %785 = vmatmul.f32.gmra.mxu0 %v718
        %v786 = vpop.f32.mrf.mxu0
        %v787 = vadd.f32 %v643, %v786
        %788 = vmatmul.f32.gmra.mxu0 %v721
        %v789 = vpop.f32.mrf.mxu0
        %v790 = vadd.f32 %v648, %v789
        %791 = vmatmul.f32.gmra.mxu0 %v724
        %v792 = vpop.f32.mrf.mxu0
        %v793 = vadd.f32 %v653, %v792
        %794 = vmatmul.f32.gmra.mxu0 %v727
        %v795 = vpop.f32.mrf.mxu0
        %v796 = vadd.f32 %v658, %v795
        %797 = vmatmul.f32.gmra.mxu0 %v730
        %v798 = vpop.f32.mrf.mxu0
        %v799 = vadd.f32 %v663, %v798
        %800 = vmatmul.f32.gmra.mxu0 %v733
        %v801 = vpop.f32.mrf.mxu0
        %v802 = vadd.f32 %v668, %v801
        %803 = vmatmul.f32.gmra.mxu0 %v736
        %v804 = vpop.f32.mrf.mxu0
        %v805 = vadd.f32 %v673, %v804
        %806 = vmatmul.f32.gmra.mxu0 %v739
        %v807 = vpop.f32.mrf.mxu0
        %v808 = vadd.f32 %v678, %v807
        %809 = vmatmul.f32.gmra.mxu0 %v742
        %v810 = vpop.f32.mrf.mxu0
        %v811 = vadd.f32 %v683, %v810
        %812 = vmatmul.f32.gmra.mxu0 %v745
        %v813 = vpop.f32.mrf.mxu0
        %v814 = vadd.f32 %v688, %v813
        %815 = vmatmul.f32.gmra.mxu0 %v748
        %v816 = vpop.f32.mrf.mxu0
        %v817 = vadd.f32 %v693, %v816
        %818 = vmatmul.f32.gmra.mxu0 %v751
        %v819 = vpop.f32.mrf.mxu0
        %v820 = vadd.f32 %v698, %v819
        %821 = vmatmul.f32.gmra.mxu0 %v754
        %v822 = vpop.f32.mrf.mxu0
        %v823 = vadd.f32 %v703, %v822
        %824 = vmatmul.f32.gmra.mxu0 %v757
        %v825 = vpop.f32.mrf.mxu0
        %v826 = vadd.f32 %v708, %v825
        %827 = vdwg.mxu0
        %v828 = vmax.f32 %v781, 0.0
        %v829 = vmax.f32 %v784, 0.0
        %v830 = vmax.f32 %v787, 0.0
        %v831 = vmax.f32 %v790, 0.0
        %v832 = vmax.f32 %v793, 0.0
        %v833 = vmax.f32 %v796, 0.0
        %v834 = vmax.f32 %v799, 0.0
        %v835 = vmax.f32 %v802, 0.0
        %v836 = vmax.f32 %v805, 0.0
        %v837 = vmax.f32 %v808, 0.0
        %v838 = vmax.f32 %v811, 0.0
        %v839 = vmax.f32 %v814, 0.0
        %v840 = vmax.f32 %v817, 0.0
        %v841 = vmax.f32 %v820, 0.0
        %v842 = vmax.f32 %v823, 0.0
        %v843 = vmax.f32 %v826, 0.0
        %v844 = vpack.c.bf16 %v829, %v828
        %v845 = vpack.c.bf16 %v831, %v830
        %v846 = vpack.c.bf16 %v833, %v832
        %v847 = vpack.c.bf16 %v835, %v834
        %v848 = vpack.c.bf16 %v837, %v836
        %v849 = vpack.c.bf16 %v839, %v838
        %v850 = vpack.c.bf16 %v841, %v840
        %v851 = vpack.c.bf16 %v843, %v842
        %v852 = vld [vmem:[%s4] sm:$0xf]
        %v853 = vld [vmem:[%s4 + $0x4] sm:$0xf]
        %v854 = vld [vmem:[%s4 + $0x8] sm:$0xf]
        %v855 = vld [vmem:[%s4 + $0xc] sm:$0xf]
        %v856 = vld [vmem:[%s4 + $0x10] sm:$0xf]
        %v857 = vld [vmem:[%s4 + $0x14] sm:$0xf]
        %v858 = vld [vmem:[%s4 + $0x18] sm:$0xf]
        %v859 = vld [vmem:[%s4 + $0x1c] sm:$0xf]
        %v860 = vld [vmem:[%s4 + $0x20] sm:$0xf]
        %v861 = vld [vmem:[%s4 + $0x24] sm:$0xf]
        %v862 = vld [vmem:[%s4 + $0x28] sm:$0xf]
        %v863 = vld [vmem:[%s4 + $0x2c] sm:$0xf]
        %v864 = vld [vmem:[%s4 + $0x30] sm:$0xf]
        %v865 = vld [vmem:[%s4 + $0x34] sm:$0xf]
        %v866 = vld [vmem:[%s4 + $0x38] sm:$0xf]
        %v867 = vld [vmem:[%s4 + $0x3c] sm:$0xf]
        %v868 = vld [vmem:[%s4 + $0x40] sm:$0xf]
        %v869 = vld [vmem:[%s4 + $0x44] sm:$0xf]
        %v870 = vld [vmem:[%s4 + $0x48] sm:$0xf]
        %v871 = vld [vmem:[%s4 + $0x4c] sm:$0xf]
        %v872 = vld [vmem:[%s4 + $0x50] sm:$0xf]
        %v873 = vld [vmem:[%s4 + $0x54] sm:$0xf]
        %v874 = vld [vmem:[%s4 + $0x58] sm:$0xf]
        %v875 = vld [vmem:[%s4 + $0x5c] sm:$0xf]
        %v876 = vld [vmem:[%s4 + $0x60] sm:$0xf]
        %v877 = vld [vmem:[%s4 + $0x64] sm:$0xf]
        %v878 = vld [vmem:[%s4 + $0x68] sm:$0xf]
        %v879 = vld [vmem:[%s4 + $0x6c] sm:$0xf]
        %v880 = vld [vmem:[%s4 + $0x70] sm:$0xf]
        %v881 = vld [vmem:[%s4 + $0x74] sm:$0xf]
        %v882 = vld [vmem:[%s4 + $0x78] sm:$0xf]
        %v883 = vld [vmem:[%s4 + $0x7c] sm:$0xf]
        %v884 = vld [vmem:[%s5] sm:$0xff]
        %v885 = vld [vmem:[%s5 + $0x8] sm:$0xff]
        %v886 = vld [vmem:[%s5 + $0x10] sm:$0xff]
        %v887 = vld [vmem:[%s5 + $0x18] sm:$0xff]
        %v888 = vld [vmem:[%s5 + $0x20] sm:$0xff]
        %v889 = vld [vmem:[%s5 + $0x28] sm:$0xff]
        %v890 = vld [vmem:[%s5 + $0x30] sm:$0xff]
        %v891 = vld [vmem:[%s5 + $0x38] sm:$0xff]
        %v892 = vld [vmem:[%s5 + $0x40] sm:$0xff]
        %v893 = vld [vmem:[%s5 + $0x48] sm:$0xff]
        %v894 = vld [vmem:[%s5 + $0x50] sm:$0xff]
        %v895 = vld [vmem:[%s5 + $0x58] sm:$0xff]
        %v896 = vld [vmem:[%s5 + $0x60] sm:$0xff]
        %v897 = vld [vmem:[%s5 + $0x68] sm:$0xff]
        %v898 = vld [vmem:[%s5 + $0x70] sm:$0xff]
        %v899 = vld [vmem:[%s5 + $0x78] sm:$0xff]
        %v900 = vld [vmem:[%s5 + $0x80] sm:$0xff]
        %v901 = vld [vmem:[%s5 + $0x88] sm:$0xff]
        %v902 = vld [vmem:[%s5 + $0x90] sm:$0xff]
        %v903 = vld [vmem:[%s5 + $0x98] sm:$0xff]
        %v904 = vld [vmem:[%s5 + $0xa0] sm:$0xff]
        %v905 = vld [vmem:[%s5 + $0xa8] sm:$0xff]
        %v906 = vld [vmem:[%s5 + $0xb0] sm:$0xff]
        %v907 = vld [vmem:[%s5 + $0xb8] sm:$0xff]
        %v908 = vld [vmem:[%s5 + $0xc0] sm:$0xff]
        %v909 = vld [vmem:[%s5 + $0xc8] sm:$0xff]
        %v910 = vld [vmem:[%s5 + $0xd0] sm:$0xff]
        %v911 = vld [vmem:[%s5 + $0xd8] sm:$0xff]
        %v912 = vld [vmem:[%s5 + $0xe0] sm:$0xff]
        %v913 = vld [vmem:[%s5 + $0xe8] sm:$0xff]
        %v914 = vld [vmem:[%s5 + $0xf0] sm:$0xff]
        %v915 = vld [vmem:[%s5 + $0xf8] sm:$0xff]
        %917 = vset.pattern.permute.xlu0 0
        %918 = vperm.xlu0 %917, %v884
        %v919 = vpop.permute.xlu0 %918
        %922 = vset.pattern.permute.xlu0 0
        %923 = vperm.xlu0 %922, %v885
        %v924 = vpop.permute.xlu0 %923
        %927 = vset.pattern.permute.xlu0 0
        %928 = vperm.xlu0 %927, %v886
        %v929 = vpop.permute.xlu0 %928
        %932 = vset.pattern.permute.xlu0 0
        %933 = vperm.xlu0 %932, %v887
        %v934 = vpop.permute.xlu0 %933
        %937 = vset.pattern.permute.xlu0 0
        %938 = vperm.xlu0 %937, %v888
        %v939 = vpop.permute.xlu0 %938
        %942 = vset.pattern.permute.xlu0 0
        %943 = vperm.xlu0 %942, %v889
        %v944 = vpop.permute.xlu0 %943
        %947 = vset.pattern.permute.xlu0 0
        %948 = vperm.xlu0 %947, %v890
        %v949 = vpop.permute.xlu0 %948
        %952 = vset.pattern.permute.xlu0 0
        %953 = vperm.xlu0 %952, %v891
        %v954 = vpop.permute.xlu0 %953
        %957 = vset.pattern.permute.xlu0 0
        %958 = vperm.xlu0 %957, %v892
        %v959 = vpop.permute.xlu0 %958
        %962 = vset.pattern.permute.xlu0 0
        %963 = vperm.xlu0 %962, %v893
        %v964 = vpop.permute.xlu0 %963
        %967 = vset.pattern.permute.xlu0 0
        %968 = vperm.xlu0 %967, %v894
        %v969 = vpop.permute.xlu0 %968
        %972 = vset.pattern.permute.xlu0 0
        %973 = vperm.xlu0 %972, %v895
        %v974 = vpop.permute.xlu0 %973
        %977 = vset.pattern.permute.xlu0 0
        %978 = vperm.xlu0 %977, %v896
        %v979 = vpop.permute.xlu0 %978
        %982 = vset.pattern.permute.xlu0 0
        %983 = vperm.xlu0 %982, %v897
        %v984 = vpop.permute.xlu0 %983
        %987 = vset.pattern.permute.xlu0 0
        %988 = vperm.xlu0 %987, %v898
        %v989 = vpop.permute.xlu0 %988
        %992 = vset.pattern.permute.xlu0 0
        %993 = vperm.xlu0 %992, %v899
        %v994 = vpop.permute.xlu0 %993
        %997 = vset.pattern.permute.xlu0 0
        %998 = vperm.xlu0 %997, %v900
        %v999 = vpop.permute.xlu0 %998
        %1002 = vset.pattern.permute.xlu0 0
        %1003 = vperm.xlu0 %1002, %v901
        %v1004 = vpop.permute.xlu0 %1003
        %1007 = vset.pattern.permute.xlu0 0
        %1008 = vperm.xlu0 %1007, %v902
        %v1009 = vpop.permute.xlu0 %1008
        %1012 = vset.pattern.permute.xlu0 0
        %1013 = vperm.xlu0 %1012, %v903
        %v1014 = vpop.permute.xlu0 %1013
        %1017 = vset.pattern.permute.xlu0 0
        %1018 = vperm.xlu0 %1017, %v904
        %v1019 = vpop.permute.xlu0 %1018
        %1022 = vset.pattern.permute.xlu0 0
        %1023 = vperm.xlu0 %1022, %v905
        %v1024 = vpop.permute.xlu0 %1023
        %1027 = vset.pattern.permute.xlu0 0
        %1028 = vperm.xlu0 %1027, %v906
        %v1029 = vpop.permute.xlu0 %1028
        %1032 = vset.pattern.permute.xlu0 0
        %1033 = vperm.xlu0 %1032, %v907
        %v1034 = vpop.permute.xlu0 %1033
        %1037 = vset.pattern.permute.xlu0 0
        %1038 = vperm.xlu0 %1037, %v908
        %v1039 = vpop.permute.xlu0 %1038
        %1042 = vset.pattern.permute.xlu0 0
        %1043 = vperm.xlu0 %1042, %v909
        %v1044 = vpop.permute.xlu0 %1043
        %1047 = vset.pattern.permute.xlu0 0
        %1048 = vperm.xlu0 %1047, %v910
        %v1049 = vpop.permute.xlu0 %1048
        %1052 = vset.pattern.permute.xlu0 0
        %1053 = vperm.xlu0 %1052, %v911
        %v1054 = vpop.permute.xlu0 %1053
        %1057 = vset.pattern.permute.xlu0 0
        %1058 = vperm.xlu0 %1057, %v912
        %v1059 = vpop.permute.xlu0 %1058
        %1062 = vset.pattern.permute.xlu0 0
        %1063 = vperm.xlu0 %1062, %v913
        %v1064 = vpop.permute.xlu0 %1063
        %1067 = vset.pattern.permute.xlu0 0
        %1068 = vperm.xlu0 %1067, %v914
        %v1069 = vpop.permute.xlu0 %1068
        %1072 = vset.pattern.permute.xlu0 0
        %1073 = vperm.xlu0 %1072, %v915
        %v1074 = vpop.permute.xlu0 %1073
        %v1108 = vunpack.c.l.b16 %v852
        %v1109 = vunpack.c.l.b16 %v853
        %v1110 = vunpack.c.l.b16 %v854
        %v1111 = vunpack.c.l.b16 %v855
        %v1112 = vunpack.c.l.b16 %v856
        %v1113 = vunpack.c.l.b16 %v857
        %v1114 = vunpack.c.l.b16 %v858
        %v1115 = vunpack.c.l.b16 %v859
        %v1116 = vunpack.c.l.b16 %v860
        %v1117 = vunpack.c.l.b16 %v861
        %v1118 = vunpack.c.l.b16 %v862
        %v1119 = vunpack.c.l.b16 %v863
        %v1120 = vunpack.c.l.b16 %v864
        %v1121 = vunpack.c.l.b16 %v865
        %v1122 = vunpack.c.l.b16 %v866
        %v1123 = vunpack.c.l.b16 %v867
        %v1124 = vunpack.c.l.b16 %v868
        %v1125 = vunpack.c.l.b16 %v869
        %v1126 = vunpack.c.l.b16 %v870
        %v1127 = vunpack.c.l.b16 %v871
        %v1128 = vunpack.c.l.b16 %v872
        %v1129 = vunpack.c.l.b16 %v873
        %v1130 = vunpack.c.l.b16 %v874
        %v1131 = vunpack.c.l.b16 %v875
        %v1132 = vunpack.c.l.b16 %v876
        %v1133 = vunpack.c.l.b16 %v877
        %v1134 = vunpack.c.l.b16 %v878
        %v1135 = vunpack.c.l.b16 %v879
        %v1136 = vunpack.c.l.b16 %v880
        %v1137 = vunpack.c.l.b16 %v881
        %v1138 = vunpack.c.l.b16 %v882
        %v1139 = vunpack.c.l.b16 %v883
        %v1140 = vpack.c.b16 %v1109, %v1108
        %v1141 = vpack.c.b16 %v1111, %v1110
        %v1142 = vpack.c.b16 %v1113, %v1112
        %v1143 = vpack.c.b16 %v1115, %v1114
        %v1144 = vpack.c.b16 %v1117, %v1116
        %v1145 = vpack.c.b16 %v1119, %v1118
        %v1146 = vpack.c.b16 %v1121, %v1120
        %v1147 = vpack.c.b16 %v1123, %v1122
        %v1148 = vpack.c.b16 %v1125, %v1124
        %v1149 = vpack.c.b16 %v1127, %v1126
        %v1150 = vpack.c.b16 %v1129, %v1128
        %v1151 = vpack.c.b16 %v1131, %v1130
        %v1152 = vpack.c.b16 %v1133, %v1132
        %v1153 = vpack.c.b16 %v1135, %v1134
        %v1154 = vpack.c.b16 %v1137, %v1136
        %v1155 = vpack.c.b16 %v1139, %v1138
        %1172 = vmatpush.bf16.msra.mxu0 %v851
        %1173 = vmatpush.bf16.msra.mxu0 %v850
        %1174 = vmatpush.bf16.msra.mxu0 %v849
        %1175 = vmatpush.bf16.msra.mxu0 %v848
        %1176 = vmatpush.bf16.msra.mxu0 %v847
        %1177 = vmatpush.bf16.msra.mxu0 %v846
        %1178 = vmatpush.bf16.msra.mxu0 %v845
        %1179 = vmatpush.bf16.msra.mxu0 %v844
        %1180 = vmatmul.bf16.gmra.mxu0 %v1140
        %v1181 = vpop.f32.mrf.mxu0
        %v1182 = vadd.f32 %v919, %v1181
        %v1183 = vpop.f32.mrf.mxu0
        %v1184 = vadd.f32 %v924, %v1183
        %1185 = vmatmul.bf16.gmra.mxu0 %v1141
        %v1186 = vpop.f32.mrf.mxu0
        %v1187 = vadd.f32 %v929, %v1186
        %v1188 = vpop.f32.mrf.mxu0
        %v1189 = vadd.f32 %v934, %v1188
        %1190 = vmatmul.bf16.gmra.mxu0 %v1142
        %v1191 = vpop.f32.mrf.mxu0
        %v1192 = vadd.f32 %v939, %v1191
        %v1193 = vpop.f32.mrf.mxu0
        %v1194 = vadd.f32 %v944, %v1193
        %1195 = vmatmul.bf16.gmra.mxu0 %v1143
        %v1196 = vpop.f32.mrf.mxu0
        %v1197 = vadd.f32 %v949, %v1196
        %v1198 = vpop.f32.mrf.mxu0
        %v1199 = vadd.f32 %v954, %v1198
        %1200 = vmatmul.bf16.gmra.mxu0 %v1144
        %v1201 = vpop.f32.mrf.mxu0
        %v1202 = vadd.f32 %v959, %v1201
        %v1203 = vpop.f32.mrf.mxu0
        %v1204 = vadd.f32 %v964, %v1203
        %1205 = vmatmul.bf16.gmra.mxu0 %v1145
        %v1206 = vpop.f32.mrf.mxu0
        %v1207 = vadd.f32 %v969, %v1206
        %v1208 = vpop.f32.mrf.mxu0
        %v1209 = vadd.f32 %v974, %v1208
        %1210 = vmatmul.bf16.gmra.mxu0 %v1146
        %v1211 = vpop.f32.mrf.mxu0
        %v1212 = vadd.f32 %v979, %v1211
        %v1213 = vpop.f32.mrf.mxu0
        %v1214 = vadd.f32 %v984, %v1213
        %1215 = vmatmul.bf16.gmra.mxu0 %v1147
        %v1216 = vpop.f32.mrf.mxu0
        %v1217 = vadd.f32 %v989, %v1216
        %v1218 = vpop.f32.mrf.mxu0
        %v1219 = vadd.f32 %v994, %v1218
        %1220 = vmatmul.bf16.gmra.mxu0 %v1148
        %v1221 = vpop.f32.mrf.mxu0
        %v1222 = vadd.f32 %v999, %v1221
        %v1223 = vpop.f32.mrf.mxu0
        %v1224 = vadd.f32 %v1004, %v1223
        %1225 = vmatmul.bf16.gmra.mxu0 %v1149
        %v1226 = vpop.f32.mrf.mxu0
        %v1227 = vadd.f32 %v1009, %v1226
        %v1228 = vpop.f32.mrf.mxu0
        %v1229 = vadd.f32 %v1014, %v1228
        %1230 = vmatmul.bf16.gmra.mxu0 %v1150
        %v1231 = vpop.f32.mrf.mxu0
        %v1232 = vadd.f32 %v1019, %v1231
        %v1233 = vpop.f32.mrf.mxu0
        %v1234 = vadd.f32 %v1024, %v1233
        %1235 = vmatmul.bf16.gmra.mxu0 %v1151
        %v1236 = vpop.f32.mrf.mxu0
        %v1237 = vadd.f32 %v1029, %v1236
        %v1238 = vpop.f32.mrf.mxu0
        %v1239 = vadd.f32 %v1034, %v1238
        %1240 = vmatmul.bf16.gmra.mxu0 %v1152
        %v1241 = vpop.f32.mrf.mxu0
        %v1242 = vadd.f32 %v1039, %v1241
        %v1243 = vpop.f32.mrf.mxu0
        %v1244 = vadd.f32 %v1044, %v1243
        %1245 = vmatmul.bf16.gmra.mxu0 %v1153
        %v1246 = vpop.f32.mrf.mxu0
        %v1247 = vadd.f32 %v1049, %v1246
        %v1248 = vpop.f32.mrf.mxu0
        %v1249 = vadd.f32 %v1054, %v1248
        %1250 = vmatmul.bf16.gmra.mxu0 %v1154
        %v1251 = vpop.f32.mrf.mxu0
        %v1252 = vadd.f32 %v1059, %v1251
        %v1253 = vpop.f32.mrf.mxu0
        %v1254 = vadd.f32 %v1064, %v1253
        %1255 = vmatmul.bf16.gmra.mxu0 %v1155
        %v1256 = vpop.f32.mrf.mxu0
        %v1257 = vadd.f32 %v1069, %v1256
        %v1258 = vpop.f32.mrf.mxu0
        %v1259 = vadd.f32 %v1074, %v1258
        %1260 = vdwg.mxu0
        %v1261 = vmax.f32 %v1182, 0.0
        %v1262 = vmax.f32 %v1184, 0.0
        %v1263 = vmax.f32 %v1187, 0.0
        %v1264 = vmax.f32 %v1189, 0.0
        %v1265 = vmax.f32 %v1192, 0.0
        %v1266 = vmax.f32 %v1194, 0.0
        %v1267 = vmax.f32 %v1197, 0.0
        %v1268 = vmax.f32 %v1199, 0.0
        %v1269 = vmax.f32 %v1202, 0.0
        %v1270 = vmax.f32 %v1204, 0.0
        %v1271 = vmax.f32 %v1207, 0.0
        %v1272 = vmax.f32 %v1209, 0.0
        %v1273 = vmax.f32 %v1212, 0.0
        %v1274 = vmax.f32 %v1214, 0.0
        %v1275 = vmax.f32 %v1217, 0.0
        %v1276 = vmax.f32 %v1219, 0.0
        %v1277 = vmax.f32 %v1222, 0.0
        %v1278 = vmax.f32 %v1224, 0.0
        %v1279 = vmax.f32 %v1227, 0.0
        %v1280 = vmax.f32 %v1229, 0.0
        %v1281 = vmax.f32 %v1232, 0.0
        %v1282 = vmax.f32 %v1234, 0.0
        %v1283 = vmax.f32 %v1237, 0.0
        %v1284 = vmax.f32 %v1239, 0.0
        %v1285 = vmax.f32 %v1242, 0.0
        %v1286 = vmax.f32 %v1244, 0.0
        %v1287 = vmax.f32 %v1247, 0.0
        %v1288 = vmax.f32 %v1249, 0.0
        %v1289 = vmax.f32 %v1252, 0.0
        %v1290 = vmax.f32 %v1254, 0.0
        %v1291 = vmax.f32 %v1257, 0.0
        %v1292 = vmax.f32 %v1259, 0.0
        %v1293 = vpack.c.bf16 %v1261, %v1261
        %v1294 = vpack.c.bf16 %v1262, %v1262
        %v1295 = vpack.c.bf16 %v1263, %v1263
        %v1296 = vpack.c.bf16 %v1264, %v1264
        %v1297 = vpack.c.bf16 %v1265, %v1265
        %v1298 = vpack.c.bf16 %v1266, %v1266
        %v1299 = vpack.c.bf16 %v1267, %v1267
        %v1300 = vpack.c.bf16 %v1268, %v1268
        %v1301 = vpack.c.bf16 %v1269, %v1269
        %v1302 = vpack.c.bf16 %v1270, %v1270
        %v1303 = vpack.c.bf16 %v1271, %v1271
        %v1304 = vpack.c.bf16 %v1272, %v1272
        %v1305 = vpack.c.bf16 %v1273, %v1273
        %v1306 = vpack.c.bf16 %v1274, %v1274
        %v1307 = vpack.c.bf16 %v1275, %v1275
        %v1308 = vpack.c.bf16 %v1276, %v1276
        %v1309 = vpack.c.bf16 %v1277, %v1277
        %v1310 = vpack.c.bf16 %v1278, %v1278
        %v1311 = vpack.c.bf16 %v1279, %v1279
        %v1312 = vpack.c.bf16 %v1280, %v1280
        %v1313 = vpack.c.bf16 %v1281, %v1281
        %v1314 = vpack.c.bf16 %v1282, %v1282
        %v1315 = vpack.c.bf16 %v1283, %v1283
        %v1316 = vpack.c.bf16 %v1284, %v1284
        %v1317 = vpack.c.bf16 %v1285, %v1285
        %v1318 = vpack.c.bf16 %v1286, %v1286
        %v1319 = vpack.c.bf16 %v1287, %v1287
        %v1320 = vpack.c.bf16 %v1288, %v1288
        %v1321 = vpack.c.bf16 %v1289, %v1289
        %v1322 = vpack.c.bf16 %v1290, %v1290
        %v1323 = vpack.c.bf16 %v1291, %v1291
        %v1324 = vpack.c.bf16 %v1292, %v1292
        %v1325 = vld [vmem:[%s6] sm:$0xf]
        %v1326 = vld [vmem:[%s6 + $0x4] sm:$0xf]
        %v1327 = vld [vmem:[%s6 + $0x8] sm:$0xf]
        %v1328 = vld [vmem:[%s6 + $0xc] sm:$0xf]
        %v1329 = vld [vmem:[%s6 + $0x10] sm:$0xf]
        %v1330 = vld [vmem:[%s6 + $0x14] sm:$0xf]
        %v1331 = vld [vmem:[%s6 + $0x18] sm:$0xf]
        %v1332 = vld [vmem:[%s6 + $0x1c] sm:$0xf]
        %v1333 = vld [vmem:[%s6 + $0x20] sm:$0xf]
        %v1334 = vld [vmem:[%s6 + $0x24] sm:$0xf]
        %v1335 = vld [vmem:[%s6 + $0x28] sm:$0xf]
        %v1336 = vld [vmem:[%s6 + $0x2c] sm:$0xf]
        %v1337 = vld [vmem:[%s6 + $0x30] sm:$0xf]
        %v1338 = vld [vmem:[%s6 + $0x34] sm:$0xf]
        %v1339 = vld [vmem:[%s6 + $0x38] sm:$0xf]
        %v1340 = vld [vmem:[%s6 + $0x3c] sm:$0xf]
        %v1341 = vld [vmem:[%s6 + $0x40] sm:$0xf]
        %v1342 = vld [vmem:[%s6 + $0x44] sm:$0xf]
        %v1343 = vld [vmem:[%s6 + $0x48] sm:$0xf]
        %v1344 = vld [vmem:[%s6 + $0x4c] sm:$0xf]
        %v1345 = vld [vmem:[%s6 + $0x50] sm:$0xf]
        %v1346 = vld [vmem:[%s6 + $0x54] sm:$0xf]
        %v1347 = vld [vmem:[%s6 + $0x58] sm:$0xf]
        %v1348 = vld [vmem:[%s6 + $0x5c] sm:$0xf]
        %v1349 = vld [vmem:[%s6 + $0x60] sm:$0xf]
        %v1350 = vld [vmem:[%s6 + $0x64] sm:$0xf]
        %v1351 = vld [vmem:[%s6 + $0x68] sm:$0xf]
        %v1352 = vld [vmem:[%s6 + $0x6c] sm:$0xf]
        %v1353 = vld [vmem:[%s6 + $0x70] sm:$0xf]
        %v1354 = vld [vmem:[%s6 + $0x74] sm:$0xf]
        %v1355 = vld [vmem:[%s6 + $0x78] sm:$0xf]
        %v1356 = vld [vmem:[%s6 + $0x7c] sm:$0xf]
        %v1357 = vld [vmem:[%s7] sm:$0xff]
        %v1358 = vld [vmem:[%s7 + $0x8] sm:$0xff]
        %v1359 = vld [vmem:[%s7 + $0x10] sm:$0xff]
        %v1360 = vld [vmem:[%s7 + $0x18] sm:$0xff]
        %v1361 = vld [vmem:[%s7 + $0x20] sm:$0xff]
        %v1362 = vld [vmem:[%s7 + $0x28] sm:$0xff]
        %v1363 = vld [vmem:[%s7 + $0x30] sm:$0xff]
        %v1364 = vld [vmem:[%s7 + $0x38] sm:$0xff]
        %v1365 = vld [vmem:[%s7 + $0x40] sm:$0xff]
        %v1366 = vld [vmem:[%s7 + $0x48] sm:$0xff]
        %v1367 = vld [vmem:[%s7 + $0x50] sm:$0xff]
        %v1368 = vld [vmem:[%s7 + $0x58] sm:$0xff]
        %v1369 = vld [vmem:[%s7 + $0x60] sm:$0xff]
        %v1370 = vld [vmem:[%s7 + $0x68] sm:$0xff]
        %v1371 = vld [vmem:[%s7 + $0x70] sm:$0xff]
        %v1372 = vld [vmem:[%s7 + $0x78] sm:$0xff]
        %v1373 = vld [vmem:[%s7 + $0x80] sm:$0xff]
        %v1374 = vld [vmem:[%s7 + $0x88] sm:$0xff]
        %v1375 = vld [vmem:[%s7 + $0x90] sm:$0xff]
        %v1376 = vld [vmem:[%s7 + $0x98] sm:$0xff]
        %v1377 = vld [vmem:[%s7 + $0xa0] sm:$0xff]
        %v1378 = vld [vmem:[%s7 + $0xa8] sm:$0xff]
        %v1379 = vld [vmem:[%s7 + $0xb0] sm:$0xff]
        %v1380 = vld [vmem:[%s7 + $0xb8] sm:$0xff]
        %v1381 = vld [vmem:[%s7 + $0xc0] sm:$0xff]
        %v1382 = vld [vmem:[%s7 + $0xc8] sm:$0xff]
        %v1383 = vld [vmem:[%s7 + $0xd0] sm:$0xff]
        %v1384 = vld [vmem:[%s7 + $0xd8] sm:$0xff]
        %v1385 = vld [vmem:[%s7 + $0xe0] sm:$0xff]
        %v1386 = vld [vmem:[%s7 + $0xe8] sm:$0xff]
        %v1387 = vld [vmem:[%s7 + $0xf0] sm:$0xff]
        %v1388 = vld [vmem:[%s7 + $0xf8] sm:$0xff]
        %1390 = vset.pattern.permute.xlu0 0
        %1391 = vperm.xlu0 %1390, %v1357
        %v1392 = vpop.permute.xlu0 %1391
        %1395 = vset.pattern.permute.xlu0 0
        %1396 = vperm.xlu0 %1395, %v1358
        %v1397 = vpop.permute.xlu0 %1396
        %1400 = vset.pattern.permute.xlu0 0
        %1401 = vperm.xlu0 %1400, %v1359
        %v1402 = vpop.permute.xlu0 %1401
        %1405 = vset.pattern.permute.xlu0 0
        %1406 = vperm.xlu0 %1405, %v1360
        %v1407 = vpop.permute.xlu0 %1406
        %1410 = vset.pattern.permute.xlu0 0
        %1411 = vperm.xlu0 %1410, %v1361
        %v1412 = vpop.permute.xlu0 %1411
        %1415 = vset.pattern.permute.xlu0 0
        %1416 = vperm.xlu0 %1415, %v1362
        %v1417 = vpop.permute.xlu0 %1416
        %1420 = vset.pattern.permute.xlu0 0
        %1421 = vperm.xlu0 %1420, %v1363
        %v1422 = vpop.permute.xlu0 %1421
        %1425 = vset.pattern.permute.xlu0 0
        %1426 = vperm.xlu0 %1425, %v1364
        %v1427 = vpop.permute.xlu0 %1426
        %1430 = vset.pattern.permute.xlu0 0
        %1431 = vperm.xlu0 %1430, %v1365
        %v1432 = vpop.permute.xlu0 %1431
        %1435 = vset.pattern.permute.xlu0 0
        %1436 = vperm.xlu0 %1435, %v1366
        %v1437 = vpop.permute.xlu0 %1436
        %1440 = vset.pattern.permute.xlu0 0
        %1441 = vperm.xlu0 %1440, %v1367
        %v1442 = vpop.permute.xlu0 %1441
        %1445 = vset.pattern.permute.xlu0 0
        %1446 = vperm.xlu0 %1445, %v1368
        %v1447 = vpop.permute.xlu0 %1446
        %1450 = vset.pattern.permute.xlu0 0
        %1451 = vperm.xlu0 %1450, %v1369
        %v1452 = vpop.permute.xlu0 %1451
        %1455 = vset.pattern.permute.xlu0 0
        %1456 = vperm.xlu0 %1455, %v1370
        %v1457 = vpop.permute.xlu0 %1456
        %1460 = vset.pattern.permute.xlu0 0
        %1461 = vperm.xlu0 %1460, %v1371
        %v1462 = vpop.permute.xlu0 %1461
        %1465 = vset.pattern.permute.xlu0 0
        %1466 = vperm.xlu0 %1465, %v1372
        %v1467 = vpop.permute.xlu0 %1466
        %1470 = vset.pattern.permute.xlu0 0
        %1471 = vperm.xlu0 %1470, %v1373
        %v1472 = vpop.permute.xlu0 %1471
        %1475 = vset.pattern.permute.xlu0 0
        %1476 = vperm.xlu0 %1475, %v1374
        %v1477 = vpop.permute.xlu0 %1476
        %1480 = vset.pattern.permute.xlu0 0
        %1481 = vperm.xlu0 %1480, %v1375
        %v1482 = vpop.permute.xlu0 %1481
        %1485 = vset.pattern.permute.xlu0 0
        %1486 = vperm.xlu0 %1485, %v1376
        %v1487 = vpop.permute.xlu0 %1486
        %1490 = vset.pattern.permute.xlu0 0
        %1491 = vperm.xlu0 %1490, %v1377
        %v1492 = vpop.permute.xlu0 %1491
        %1495 = vset.pattern.permute.xlu0 0
        %1496 = vperm.xlu0 %1495, %v1378
        %v1497 = vpop.permute.xlu0 %1496
        %1500 = vset.pattern.permute.xlu0 0
        %1501 = vperm.xlu0 %1500, %v1379
        %v1502 = vpop.permute.xlu0 %1501
        %1505 = vset.pattern.permute.xlu0 0
        %1506 = vperm.xlu0 %1505, %v1380
        %v1507 = vpop.permute.xlu0 %1506
        %1510 = vset.pattern.permute.xlu0 0
        %1511 = vperm.xlu0 %1510, %v1381
        %v1512 = vpop.permute.xlu0 %1511
        %1515 = vset.pattern.permute.xlu0 0
        %1516 = vperm.xlu0 %1515, %v1382
        %v1517 = vpop.permute.xlu0 %1516
        %1520 = vset.pattern.permute.xlu0 0
        %1521 = vperm.xlu0 %1520, %v1383
        %v1522 = vpop.permute.xlu0 %1521
        %1525 = vset.pattern.permute.xlu0 0
        %1526 = vperm.xlu0 %1525, %v1384
        %v1527 = vpop.permute.xlu0 %1526
        %1530 = vset.pattern.permute.xlu0 0
        %1531 = vperm.xlu0 %1530, %v1385
        %v1532 = vpop.permute.xlu0 %1531
        %1535 = vset.pattern.permute.xlu0 0
        %1536 = vperm.xlu0 %1535, %v1386
        %v1537 = vpop.permute.xlu0 %1536
        %1540 = vset.pattern.permute.xlu0 0
        %1541 = vperm.xlu0 %1540, %v1387
        %v1542 = vpop.permute.xlu0 %1541
        %1545 = vset.pattern.permute.xlu0 0
        %1546 = vperm.xlu0 %1545, %v1388
        %v1547 = vpop.permute.xlu0 %1546
        %v1581 = vunpack.c.l.b16 %v1325
        %v1582 = vunpack.c.l.b16 %v1326
        %v1583 = vunpack.c.l.b16 %v1327
        %v1584 = vunpack.c.l.b16 %v1328
        %v1585 = vunpack.c.l.b16 %v1329
        %v1586 = vunpack.c.l.b16 %v1330
        %v1587 = vunpack.c.l.b16 %v1331
        %v1588 = vunpack.c.l.b16 %v1332
        %v1589 = vunpack.c.l.b16 %v1333
        %v1590 = vunpack.c.l.b16 %v1334
        %v1591 = vunpack.c.l.b16 %v1335
        %v1592 = vunpack.c.l.b16 %v1336
        %v1593 = vunpack.c.l.b16 %v1337
        %v1594 = vunpack.c.l.b16 %v1338
        %v1595 = vunpack.c.l.b16 %v1339
        %v1596 = vunpack.c.l.b16 %v1340
        %v1597 = vunpack.c.l.b16 %v1341
        %v1598 = vunpack.c.l.b16 %v1342
        %v1599 = vunpack.c.l.b16 %v1343
        %v1600 = vunpack.c.l.b16 %v1344
        %v1601 = vunpack.c.l.b16 %v1345
        %v1602 = vunpack.c.l.b16 %v1346
        %v1603 = vunpack.c.l.b16 %v1347
        %v1604 = vunpack.c.l.b16 %v1348
        %v1605 = vunpack.c.l.b16 %v1349
        %v1606 = vunpack.c.l.b16 %v1350
        %v1607 = vunpack.c.l.b16 %v1351
        %v1608 = vunpack.c.l.b16 %v1352
        %v1609 = vunpack.c.l.b16 %v1353
        %v1610 = vunpack.c.l.b16 %v1354
        %v1611 = vunpack.c.l.b16 %v1355
        %v1612 = vunpack.c.l.b16 %v1356
        %v1613 = vpack.c.b16 %v1582, %v1581
        %v1614 = vpack.c.b16 %v1584, %v1583
        %v1615 = vpack.c.b16 %v1586, %v1585
        %v1616 = vpack.c.b16 %v1588, %v1587
        %v1617 = vpack.c.b16 %v1590, %v1589
        %v1618 = vpack.c.b16 %v1592, %v1591
        %v1619 = vpack.c.b16 %v1594, %v1593
        %v1620 = vpack.c.b16 %v1596, %v1595
        %v1621 = vpack.c.b16 %v1598, %v1597
        %v1622 = vpack.c.b16 %v1600, %v1599
        %v1623 = vpack.c.b16 %v1602, %v1601
        %v1624 = vpack.c.b16 %v1604, %v1603
        %v1625 = vpack.c.b16 %v1606, %v1605
        %v1626 = vpack.c.b16 %v1608, %v1607
        %v1627 = vpack.c.b16 %v1610, %v1609
        %v1628 = vpack.c.b16 %v1612, %v1611
        %v1661 = vunpack.c.l.b16 %v1293
        %v1662 = vunpack.c.l.b16 %v1294
        %v1663 = vunpack.c.l.b16 %v1295
        %v1664 = vunpack.c.l.b16 %v1296
        %v1665 = vunpack.c.l.b16 %v1297
        %v1666 = vunpack.c.l.b16 %v1298
        %v1667 = vunpack.c.l.b16 %v1299
        %v1668 = vunpack.c.l.b16 %v1300
        %v1669 = vunpack.c.l.b16 %v1301
        %v1670 = vunpack.c.l.b16 %v1302
        %v1671 = vunpack.c.l.b16 %v1303
        %v1672 = vunpack.c.l.b16 %v1304
        %v1673 = vunpack.c.l.b16 %v1305
        %v1674 = vunpack.c.l.b16 %v1306
        %v1675 = vunpack.c.l.b16 %v1307
        %v1676 = vunpack.c.l.b16 %v1308
        %v1677 = vpack.c.b16 %v1662, %v1661
        %v1678 = vpack.c.b16 %v1664, %v1663
        %v1679 = vpack.c.b16 %v1666, %v1665
        %v1680 = vpack.c.b16 %v1668, %v1667
        %v1681 = vpack.c.b16 %v1670, %v1669
        %v1682 = vpack.c.b16 %v1672, %v1671
        %v1683 = vpack.c.b16 %v1674, %v1673
        %v1684 = vpack.c.b16 %v1676, %v1675
        %1693 = vmatpush.bf16.msra.mxu0 %v1684
        %1694 = vmatpush.bf16.msra.mxu0 %v1683
        %1695 = vmatpush.bf16.msra.mxu0 %v1682
        %1696 = vmatpush.bf16.msra.mxu0 %v1681
        %1697 = vmatpush.bf16.msra.mxu0 %v1680
        %1698 = vmatpush.bf16.msra.mxu0 %v1679
        %1699 = vmatpush.bf16.msra.mxu0 %v1678
        %1700 = vmatpush.bf16.msra.mxu0 %v1677
        %1701 = vmatmul.bf16.gmra.mxu0 %v1613
        %v1702 = vpop.f32.mrf.mxu0
        %v1703 = vadd.f32 %v1392, %v1702
        %v1704 = vpop.f32.mrf.mxu0
        %v1705 = vadd.f32 %v1397, %v1704
        %1706 = vmatmul.bf16.gmra.mxu0 %v1614
        %v1707 = vpop.f32.mrf.mxu0
        %v1708 = vadd.f32 %v1402, %v1707
        %v1709 = vpop.f32.mrf.mxu0
        %v1710 = vadd.f32 %v1407, %v1709
        %1711 = vmatmul.bf16.gmra.mxu0 %v1615
        %v1712 = vpop.f32.mrf.mxu0
        %v1713 = vadd.f32 %v1412, %v1712
        %v1714 = vpop.f32.mrf.mxu0
        %v1715 = vadd.f32 %v1417, %v1714
        %1716 = vmatmul.bf16.gmra.mxu0 %v1616
        %v1717 = vpop.f32.mrf.mxu0
        %v1718 = vadd.f32 %v1422, %v1717
        %v1719 = vpop.f32.mrf.mxu0
        %v1720 = vadd.f32 %v1427, %v1719
        %1721 = vmatmul.bf16.gmra.mxu0 %v1617
        %v1722 = vpop.f32.mrf.mxu0
        %v1723 = vadd.f32 %v1432, %v1722
        %v1724 = vpop.f32.mrf.mxu0
        %v1725 = vadd.f32 %v1437, %v1724
        %1726 = vmatmul.bf16.gmra.mxu0 %v1618
        %v1727 = vpop.f32.mrf.mxu0
        %v1728 = vadd.f32 %v1442, %v1727
        %v1729 = vpop.f32.mrf.mxu0
        %v1730 = vadd.f32 %v1447, %v1729
        %1731 = vmatmul.bf16.gmra.mxu0 %v1619
        %v1732 = vpop.f32.mrf.mxu0
        %v1733 = vadd.f32 %v1452, %v1732
        %v1734 = vpop.f32.mrf.mxu0
        %v1735 = vadd.f32 %v1457, %v1734
        %1736 = vmatmul.bf16.gmra.mxu0 %v1620
        %v1737 = vpop.f32.mrf.mxu0
        %v1738 = vadd.f32 %v1462, %v1737
        %v1739 = vpop.f32.mrf.mxu0
        %v1740 = vadd.f32 %v1467, %v1739
        %1741 = vmatmul.bf16.gmra.mxu0 %v1621
        %v1742 = vpop.f32.mrf.mxu0
        %v1743 = vadd.f32 %v1472, %v1742
        %v1744 = vpop.f32.mrf.mxu0
        %v1745 = vadd.f32 %v1477, %v1744
        %1746 = vmatmul.bf16.gmra.mxu0 %v1622
        %v1747 = vpop.f32.mrf.mxu0
        %v1748 = vadd.f32 %v1482, %v1747
        %v1749 = vpop.f32.mrf.mxu0
        %v1750 = vadd.f32 %v1487, %v1749
        %1751 = vmatmul.bf16.gmra.mxu0 %v1623
        %v1752 = vpop.f32.mrf.mxu0
        %v1753 = vadd.f32 %v1492, %v1752
        %v1754 = vpop.f32.mrf.mxu0
        %v1755 = vadd.f32 %v1497, %v1754
        %1756 = vmatmul.bf16.gmra.mxu0 %v1624
        %v1757 = vpop.f32.mrf.mxu0
        %v1758 = vadd.f32 %v1502, %v1757
        %v1759 = vpop.f32.mrf.mxu0
        %v1760 = vadd.f32 %v1507, %v1759
        %1761 = vmatmul.bf16.gmra.mxu0 %v1625
        %v1762 = vpop.f32.mrf.mxu0
        %v1763 = vadd.f32 %v1512, %v1762
        %v1764 = vpop.f32.mrf.mxu0
        %v1765 = vadd.f32 %v1517, %v1764
        %1766 = vmatmul.bf16.gmra.mxu0 %v1626
        %v1767 = vpop.f32.mrf.mxu0
        %v1768 = vadd.f32 %v1522, %v1767
        %v1769 = vpop.f32.mrf.mxu0
        %v1770 = vadd.f32 %v1527, %v1769
        %1771 = vmatmul.bf16.gmra.mxu0 %v1627
        %v1772 = vpop.f32.mrf.mxu0
        %v1773 = vadd.f32 %v1532, %v1772
        %v1774 = vpop.f32.mrf.mxu0
        %v1775 = vadd.f32 %v1537, %v1774
        %1776 = vmatmul.bf16.gmra.mxu0 %v1628
        %v1777 = vpop.f32.mrf.mxu0
        %v1778 = vadd.f32 %v1542, %v1777
        %v1779 = vpop.f32.mrf.mxu0
        %v1780 = vadd.f32 %v1547, %v1779
        %1781 = vdwg.mxu0
        %v1782 = vmax.f32 %v1703, 0.0
        %v1783 = vmax.f32 %v1705, 0.0
        %v1784 = vmax.f32 %v1708, 0.0
        %v1785 = vmax.f32 %v1710, 0.0
        %v1786 = vmax.f32 %v1713, 0.0
        %v1787 = vmax.f32 %v1715, 0.0
        %v1788 = vmax.f32 %v1718, 0.0
        %v1789 = vmax.f32 %v1720, 0.0
        %v1790 = vmax.f32 %v1723, 0.0
        %v1791 = vmax.f32 %v1725, 0.0
        %v1792 = vmax.f32 %v1728, 0.0
        %v1793 = vmax.f32 %v1730, 0.0
        %v1794 = vmax.f32 %v1733, 0.0
        %v1795 = vmax.f32 %v1735, 0.0
        %v1796 = vmax.f32 %v1738, 0.0
        %v1797 = vmax.f32 %v1740, 0.0
        %v1798 = vmax.f32 %v1743, 0.0
        %v1799 = vmax.f32 %v1745, 0.0
        %v1800 = vmax.f32 %v1748, 0.0
        %v1801 = vmax.f32 %v1750, 0.0
        %v1802 = vmax.f32 %v1753, 0.0
        %v1803 = vmax.f32 %v1755, 0.0
        %v1804 = vmax.f32 %v1758, 0.0
        %v1805 = vmax.f32 %v1760, 0.0
        %v1806 = vmax.f32 %v1763, 0.0
        %v1807 = vmax.f32 %v1765, 0.0
        %v1808 = vmax.f32 %v1768, 0.0
        %v1809 = vmax.f32 %v1770, 0.0
        %v1810 = vmax.f32 %v1773, 0.0
        %v1811 = vmax.f32 %v1775, 0.0
        %v1812 = vmax.f32 %v1778, 0.0
        %v1813 = vmax.f32 %v1780, 0.0
        %v1814 = vpack.c.bf16 %v1783, %v1782
        %v1815 = vpack.c.bf16 %v1785, %v1784
        %v1816 = vpack.c.bf16 %v1787, %v1786
        %v1817 = vpack.c.bf16 %v1789, %v1788
        %v1818 = vpack.c.bf16 %v1791, %v1790
        %v1819 = vpack.c.bf16 %v1793, %v1792
        %v1820 = vpack.c.bf16 %v1795, %v1794
        %v1821 = vpack.c.bf16 %v1797, %v1796
        %v1822 = vpack.c.bf16 %v1799, %v1798
        %v1823 = vpack.c.bf16 %v1801, %v1800
        %v1824 = vpack.c.bf16 %v1803, %v1802
        %v1825 = vpack.c.bf16 %v1805, %v1804
        %v1826 = vpack.c.bf16 %v1807, %v1806
        %v1827 = vpack.c.bf16 %v1809, %v1808
        %v1828 = vpack.c.bf16 %v1811, %v1810
        %v1829 = vpack.c.bf16 %v1813, %v1812
        %v1830 = vld [vmem:[%s8] sm:$0xf]
        %v1831 = vld [vmem:[%s9] sm:$0xf]
        %1833 = vset.pattern.permute.xlu0 0
        %1834 = vperm.xlu0 %1833, %v1831
        %v1835 = vpop.permute.xlu0 %1834
        %1838 = vst [vmem:[#allocation1] ss:$4 sm:$0xff] %v1830
        %v1839 = vld.sshfl [vmem:[#allocation1] sm:$0xff pattern:$0x73625140]
        %v1840 = vld.sshfl [vmem:[#allocation1 + $0x8] sm:$0xff pattern:$0x73625140]
        %1843 = vmatpush.bf16.msra.mxu0 %v1821
        %1844 = vmatpush.bf16.msra.mxu0 %v1820
        %1845 = vmatpush.bf16.msra.mxu0 %v1819
        %1846 = vmatpush.bf16.msra.mxu0 %v1818
        %1847 = vmatpush.bf16.msra.mxu0 %v1817
        %1848 = vmatpush.bf16.msra.mxu0 %v1816
        %1849 = vmatpush.bf16.msra.mxu0 %v1815
        %1850 = vmatpush.bf16.msra.mxu0 %v1814
        %1851 = vmatmul.bf16.gmra.mxu0 %v1839
        %v1852 = vpop.f32.mrf.mxu0
        %v1853 = vadd.f32 %v1835, %v1852
        %v1854 = vpop.f32.mrf.mxu0
        %1855 = vdwg.mxu0
        %1856 = vmatpush.bf16.msra.mxu0 %v1829
        %1857 = vmatpush.bf16.msra.mxu0 %v1828
        %1858 = vmatpush.bf16.msra.mxu0 %v1827
        %1859 = vmatpush.bf16.msra.mxu0 %v1826
        %1860 = vmatpush.bf16.msra.mxu0 %v1825
        %1861 = vmatpush.bf16.msra.mxu0 %v1824
        %1862 = vmatpush.bf16.msra.mxu0 %v1823
        %1863 = vmatpush.bf16.msra.mxu0 %v1822
        %1864 = vmatmul.bf16.gmra.mxu0 %v1840
        %v1865 = vpop.f32.mrf.mxu0
        %v1866 = vadd.f32 %v1853, %v1865
        %v1867 = vpop.f32.mrf.mxu0
        %1868 = vdwg.mxu0
        %v1869 = vld [vmem:[%s10] sm:$0xf]
        %v1870 = vld [vmem:[%s10 + $0x4] sm:$0xf]
        %v1871 = vld [vmem:[%s10 + $0x8] sm:$0xf]
        %v1872 = vld [vmem:[%s10 + $0xc] sm:$0xf]
        %v1873 = vld [vmem:[%s10 + $0x10] sm:$0xf]
        %v1874 = vld [vmem:[%s10 + $0x14] sm:$0xf]
        %v1875 = vld [vmem:[%s10 + $0x18] sm:$0xf]
        %v1876 = vld [vmem:[%s10 + $0x1c] sm:$0xf]
        %v1877 = vld [vmem:[%s10 + $0x20] sm:$0xf]
        %v1878 = vld [vmem:[%s10 + $0x24] sm:$0xf]
        %v1879 = vld [vmem:[%s10 + $0x28] sm:$0xf]
        %v1880 = vld [vmem:[%s10 + $0x2c] sm:$0xf]
        %v1881 = vld [vmem:[%s10 + $0x30] sm:$0xf]
        %v1882 = vld [vmem:[%s10 + $0x34] sm:$0xf]
        %v1883 = vld [vmem:[%s10 + $0x38] sm:$0xf]
        %v1884 = vld [vmem:[%s10 + $0x3c] sm:$0xf]
        %v1885 = vld [vmem:[%s10 + $0x40] sm:$0xf]
        %v1886 = vld [vmem:[%s10 + $0x44] sm:$0xf]
        %v1887 = vld [vmem:[%s10 + $0x48] sm:$0xf]
        %v1888 = vld [vmem:[%s10 + $0x4c] sm:$0xf]
        %v1889 = vld [vmem:[%s10 + $0x50] sm:$0xf]
        %v1890 = vld [vmem:[%s10 + $0x54] sm:$0xf]
        %v1891 = vld [vmem:[%s10 + $0x58] sm:$0xf]
        %v1892 = vld [vmem:[%s10 + $0x5c] sm:$0xf]
        %v1893 = vld [vmem:[%s10 + $0x60] sm:$0xf]
        %v1894 = vld [vmem:[%s10 + $0x64] sm:$0xf]
        %v1895 = vld [vmem:[%s10 + $0x68] sm:$0xf]
        %v1896 = vld [vmem:[%s10 + $0x6c] sm:$0xf]
        %v1897 = vld [vmem:[%s10 + $0x70] sm:$0xf]
        %v1898 = vld [vmem:[%s10 + $0x74] sm:$0xf]
        %v1899 = vld [vmem:[%s10 + $0x78] sm:$0xf]
        %v1900 = vld [vmem:[%s10 + $0x7c] sm:$0xf]
        %v1901 = vld [vmem:[%s11] sm:$0xff]
        %v1902 = vld [vmem:[%s11 + $0x8] sm:$0xff]
        %v1903 = vld [vmem:[%s11 + $0x10] sm:$0xff]
        %v1904 = vld [vmem:[%s11 + $0x18] sm:$0xff]
        %v1905 = vld [vmem:[%s11 + $0x20] sm:$0xff]
        %v1906 = vld [vmem:[%s11 + $0x28] sm:$0xff]
        %v1907 = vld [vmem:[%s11 + $0x30] sm:$0xff]
        %v1908 = vld [vmem:[%s11 + $0x38] sm:$0xff]
        %v1909 = vld [vmem:[%s11 + $0x40] sm:$0xff]
        %v1910 = vld [vmem:[%s11 + $0x48] sm:$0xff]
        %v1911 = vld [vmem:[%s11 + $0x50] sm:$0xff]
        %v1912 = vld [vmem:[%s11 + $0x58] sm:$0xff]
        %v1913 = vld [vmem:[%s11 + $0x60] sm:$0xff]
        %v1914 = vld [vmem:[%s11 + $0x68] sm:$0xff]
        %v1915 = vld [vmem:[%s11 + $0x70] sm:$0xff]
        %v1916 = vld [vmem:[%s11 + $0x78] sm:$0xff]
        %v1917 = vld [vmem:[%s11 + $0x80] sm:$0xff]
        %v1918 = vld [vmem:[%s11 + $0x88] sm:$0xff]
        %v1919 = vld [vmem:[%s11 + $0x90] sm:$0xff]
        %v1920 = vld [vmem:[%s11 + $0x98] sm:$0xff]
        %v1921 = vld [vmem:[%s11 + $0xa0] sm:$0xff]
        %v1922 = vld [vmem:[%s11 + $0xa8] sm:$0xff]
        %v1923 = vld [vmem:[%s11 + $0xb0] sm:$0xff]
        %v1924 = vld [vmem:[%s11 + $0xb8] sm:$0xff]
        %v1925 = vld [vmem:[%s11 + $0xc0] sm:$0xff]
        %v1926 = vld [vmem:[%s11 + $0xc8] sm:$0xff]
        %v1927 = vld [vmem:[%s11 + $0xd0] sm:$0xff]
        %v1928 = vld [vmem:[%s11 + $0xd8] sm:$0xff]
        %v1929 = vld [vmem:[%s11 + $0xe0] sm:$0xff]
        %v1930 = vld [vmem:[%s11 + $0xe8] sm:$0xff]
        %v1931 = vld [vmem:[%s11 + $0xf0] sm:$0xff]
        %v1932 = vld [vmem:[%s11 + $0xf8] sm:$0xff]
        %1934 = vset.pattern.permute.xlu0 0
        %1935 = vperm.xlu0 %1934, %v1901
        %v1936 = vpop.permute.xlu0 %1935
        %1939 = vset.pattern.permute.xlu0 0
        %1940 = vperm.xlu0 %1939, %v1902
        %v1941 = vpop.permute.xlu0 %1940
        %1944 = vset.pattern.permute.xlu0 0
        %1945 = vperm.xlu0 %1944, %v1903
        %v1946 = vpop.permute.xlu0 %1945
        %1949 = vset.pattern.permute.xlu0 0
        %1950 = vperm.xlu0 %1949, %v1904
        %v1951 = vpop.permute.xlu0 %1950
        %1954 = vset.pattern.permute.xlu0 0
        %1955 = vperm.xlu0 %1954, %v1905
        %v1956 = vpop.permute.xlu0 %1955
        %1959 = vset.pattern.permute.xlu0 0
        %1960 = vperm.xlu0 %1959, %v1906
        %v1961 = vpop.permute.xlu0 %1960
        %1964 = vset.pattern.permute.xlu0 0
        %1965 = vperm.xlu0 %1964, %v1907
        %v1966 = vpop.permute.xlu0 %1965
        %1969 = vset.pattern.permute.xlu0 0
        %1970 = vperm.xlu0 %1969, %v1908
        %v1971 = vpop.permute.xlu0 %1970
        %1974 = vset.pattern.permute.xlu0 0
        %1975 = vperm.xlu0 %1974, %v1909
        %v1976 = vpop.permute.xlu0 %1975
        %1979 = vset.pattern.permute.xlu0 0
        %1980 = vperm.xlu0 %1979, %v1910
        %v1981 = vpop.permute.xlu0 %1980
        %1984 = vset.pattern.permute.xlu0 0
        %1985 = vperm.xlu0 %1984, %v1911
        %v1986 = vpop.permute.xlu0 %1985
        %1989 = vset.pattern.permute.xlu0 0
        %1990 = vperm.xlu0 %1989, %v1912
        %v1991 = vpop.permute.xlu0 %1990
        %1994 = vset.pattern.permute.xlu0 0
        %1995 = vperm.xlu0 %1994, %v1913
        %v1996 = vpop.permute.xlu0 %1995
        %1999 = vset.pattern.permute.xlu0 0
        %2000 = vperm.xlu0 %1999, %v1914
        %v2001 = vpop.permute.xlu0 %2000
        %2004 = vset.pattern.permute.xlu0 0
        %2005 = vperm.xlu0 %2004, %v1915
        %v2006 = vpop.permute.xlu0 %2005
        %2009 = vset.pattern.permute.xlu0 0
        %2010 = vperm.xlu0 %2009, %v1916
        %v2011 = vpop.permute.xlu0 %2010
        %2014 = vset.pattern.permute.xlu0 0
        %2015 = vperm.xlu0 %2014, %v1917
        %v2016 = vpop.permute.xlu0 %2015
        %2019 = vset.pattern.permute.xlu0 0
        %2020 = vperm.xlu0 %2019, %v1918
        %v2021 = vpop.permute.xlu0 %2020
        %2024 = vset.pattern.permute.xlu0 0
        %2025 = vperm.xlu0 %2024, %v1919
        %v2026 = vpop.permute.xlu0 %2025
        %2029 = vset.pattern.permute.xlu0 0
        %2030 = vperm.xlu0 %2029, %v1920
        %v2031 = vpop.permute.xlu0 %2030
        %2034 = vset.pattern.permute.xlu0 0
        %2035 = vperm.xlu0 %2034, %v1921
        %v2036 = vpop.permute.xlu0 %2035
        %2039 = vset.pattern.permute.xlu0 0
        %2040 = vperm.xlu0 %2039, %v1922
        %v2041 = vpop.permute.xlu0 %2040
        %2044 = vset.pattern.permute.xlu0 0
        %2045 = vperm.xlu0 %2044, %v1923
        %v2046 = vpop.permute.xlu0 %2045
        %2049 = vset.pattern.permute.xlu0 0
        %2050 = vperm.xlu0 %2049, %v1924
        %v2051 = vpop.permute.xlu0 %2050
        %2054 = vset.pattern.permute.xlu0 0
        %2055 = vperm.xlu0 %2054, %v1925
        %v2056 = vpop.permute.xlu0 %2055
        %2059 = vset.pattern.permute.xlu0 0
        %2060 = vperm.xlu0 %2059, %v1926
        %v2061 = vpop.permute.xlu0 %2060
        %2064 = vset.pattern.permute.xlu0 0
        %2065 = vperm.xlu0 %2064, %v1927
        %v2066 = vpop.permute.xlu0 %2065
        %2069 = vset.pattern.permute.xlu0 0
        %2070 = vperm.xlu0 %2069, %v1928
        %v2071 = vpop.permute.xlu0 %2070
        %2074 = vset.pattern.permute.xlu0 0
        %2075 = vperm.xlu0 %2074, %v1929
        %v2076 = vpop.permute.xlu0 %2075
        %2079 = vset.pattern.permute.xlu0 0
        %2080 = vperm.xlu0 %2079, %v1930
        %v2081 = vpop.permute.xlu0 %2080
        %2084 = vset.pattern.permute.xlu0 0
        %2085 = vperm.xlu0 %2084, %v1931
        %v2086 = vpop.permute.xlu0 %2085
        %2089 = vset.pattern.permute.xlu0 0
        %2090 = vperm.xlu0 %2089, %v1932
        %v2091 = vpop.permute.xlu0 %2090
        %v2125 = vunpack.c.l.b16 %v1869
        %v2126 = vunpack.c.l.b16 %v1870
        %v2127 = vunpack.c.l.b16 %v1871
        %v2128 = vunpack.c.l.b16 %v1872
        %v2129 = vunpack.c.l.b16 %v1873
        %v2130 = vunpack.c.l.b16 %v1874
        %v2131 = vunpack.c.l.b16 %v1875
        %v2132 = vunpack.c.l.b16 %v1876
        %v2133 = vunpack.c.l.b16 %v1877
        %v2134 = vunpack.c.l.b16 %v1878
        %v2135 = vunpack.c.l.b16 %v1879
        %v2136 = vunpack.c.l.b16 %v1880
        %v2137 = vunpack.c.l.b16 %v1881
        %v2138 = vunpack.c.l.b16 %v1882
        %v2139 = vunpack.c.l.b16 %v1883
        %v2140 = vunpack.c.l.b16 %v1884
        %v2141 = vunpack.c.l.b16 %v1885
        %v2142 = vunpack.c.l.b16 %v1886
        %v2143 = vunpack.c.l.b16 %v1887
        %v2144 = vunpack.c.l.b16 %v1888
        %v2145 = vunpack.c.l.b16 %v1889
        %v2146 = vunpack.c.l.b16 %v1890
        %v2147 = vunpack.c.l.b16 %v1891
        %v2148 = vunpack.c.l.b16 %v1892
        %v2149 = vunpack.c.l.b16 %v1893
        %v2150 = vunpack.c.l.b16 %v1894
        %v2151 = vunpack.c.l.b16 %v1895
        %v2152 = vunpack.c.l.b16 %v1896
        %v2153 = vunpack.c.l.b16 %v1897
        %v2154 = vunpack.c.l.b16 %v1898
        %v2155 = vunpack.c.l.b16 %v1899
        %v2156 = vunpack.c.l.b16 %v1900
        %v2157 = vpack.c.b16 %v2126, %v2125
        %v2158 = vpack.c.b16 %v2128, %v2127
        %v2159 = vpack.c.b16 %v2130, %v2129
        %v2160 = vpack.c.b16 %v2132, %v2131
        %v2161 = vpack.c.b16 %v2134, %v2133
        %v2162 = vpack.c.b16 %v2136, %v2135
        %v2163 = vpack.c.b16 %v2138, %v2137
        %v2164 = vpack.c.b16 %v2140, %v2139
        %v2165 = vpack.c.b16 %v2142, %v2141
        %v2166 = vpack.c.b16 %v2144, %v2143
        %v2167 = vpack.c.b16 %v2146, %v2145
        %v2168 = vpack.c.b16 %v2148, %v2147
        %v2169 = vpack.c.b16 %v2150, %v2149
        %v2170 = vpack.c.b16 %v2152, %v2151
        %v2171 = vpack.c.b16 %v2154, %v2153
        %v2172 = vpack.c.b16 %v2156, %v2155
        %v2205 = vunpack.c.l.b16 %v1309
        %v2206 = vunpack.c.l.b16 %v1310
        %v2207 = vunpack.c.l.b16 %v1311
        %v2208 = vunpack.c.l.b16 %v1312
        %v2209 = vunpack.c.l.b16 %v1313
        %v2210 = vunpack.c.l.b16 %v1314
        %v2211 = vunpack.c.l.b16 %v1315
        %v2212 = vunpack.c.l.b16 %v1316
        %v2213 = vunpack.c.l.b16 %v1317
        %v2214 = vunpack.c.l.b16 %v1318
        %v2215 = vunpack.c.l.b16 %v1319
        %v2216 = vunpack.c.l.b16 %v1320
        %v2217 = vunpack.c.l.b16 %v1321
        %v2218 = vunpack.c.l.b16 %v1322
        %v2219 = vunpack.c.l.b16 %v1323
        %v2220 = vunpack.c.l.b16 %v1324
        %v2221 = vpack.c.b16 %v2206, %v2205
        %v2222 = vpack.c.b16 %v2208, %v2207
        %v2223 = vpack.c.b16 %v2210, %v2209
        %v2224 = vpack.c.b16 %v2212, %v2211
        %v2225 = vpack.c.b16 %v2214, %v2213
        %v2226 = vpack.c.b16 %v2216, %v2215
        %v2227 = vpack.c.b16 %v2218, %v2217
        %v2228 = vpack.c.b16 %v2220, %v2219
        %2237 = vmatpush.bf16.msra.mxu0 %v2228
        %2238 = vmatpush.bf16.msra.mxu0 %v2227
        %2239 = vmatpush.bf16.msra.mxu0 %v2226
        %2240 = vmatpush.bf16.msra.mxu0 %v2225
        %2241 = vmatpush.bf16.msra.mxu0 %v2224
        %2242 = vmatpush.bf16.msra.mxu0 %v2223
        %2243 = vmatpush.bf16.msra.mxu0 %v2222
        %2244 = vmatpush.bf16.msra.mxu0 %v2221
        %2245 = vmatmul.bf16.gmra.mxu0 %v2157
        %v2246 = vpop.f32.mrf.mxu0
        %v2247 = vadd.f32 %v1936, %v2246
        %v2248 = vpop.f32.mrf.mxu0
        %v2249 = vadd.f32 %v1941, %v2248
        %2250 = vmatmul.bf16.gmra.mxu0 %v2158
        %v2251 = vpop.f32.mrf.mxu0
        %v2252 = vadd.f32 %v1946, %v2251
        %v2253 = vpop.f32.mrf.mxu0
        %v2254 = vadd.f32 %v1951, %v2253
        %2255 = vmatmul.bf16.gmra.mxu0 %v2159
        %v2256 = vpop.f32.mrf.mxu0
        %v2257 = vadd.f32 %v1956, %v2256
        %v2258 = vpop.f32.mrf.mxu0
        %v2259 = vadd.f32 %v1961, %v2258
        %2260 = vmatmul.bf16.gmra.mxu0 %v2160
        %v2261 = vpop.f32.mrf.mxu0
        %v2262 = vadd.f32 %v1966, %v2261
        %v2263 = vpop.f32.mrf.mxu0
        %v2264 = vadd.f32 %v1971, %v2263
        %2265 = vmatmul.bf16.gmra.mxu0 %v2161
        %v2266 = vpop.f32.mrf.mxu0
        %v2267 = vadd.f32 %v1976, %v2266
        %v2268 = vpop.f32.mrf.mxu0
        %v2269 = vadd.f32 %v1981, %v2268
        %2270 = vmatmul.bf16.gmra.mxu0 %v2162
        %v2271 = vpop.f32.mrf.mxu0
        %v2272 = vadd.f32 %v1986, %v2271
        %v2273 = vpop.f32.mrf.mxu0
        %v2274 = vadd.f32 %v1991, %v2273
        %2275 = vmatmul.bf16.gmra.mxu0 %v2163
        %v2276 = vpop.f32.mrf.mxu0
        %v2277 = vadd.f32 %v1996, %v2276
        %v2278 = vpop.f32.mrf.mxu0
        %v2279 = vadd.f32 %v2001, %v2278
        %2280 = vmatmul.bf16.gmra.mxu0 %v2164
        %v2281 = vpop.f32.mrf.mxu0
        %v2282 = vadd.f32 %v2006, %v2281
        %v2283 = vpop.f32.mrf.mxu0
        %v2284 = vadd.f32 %v2011, %v2283
        %2285 = vmatmul.bf16.gmra.mxu0 %v2165
        %v2286 = vpop.f32.mrf.mxu0
        %v2287 = vadd.f32 %v2016, %v2286
        %v2288 = vpop.f32.mrf.mxu0
        %v2289 = vadd.f32 %v2021, %v2288
        %2290 = vmatmul.bf16.gmra.mxu0 %v2166
        %v2291 = vpop.f32.mrf.mxu0
        %v2292 = vadd.f32 %v2026, %v2291
        %v2293 = vpop.f32.mrf.mxu0
        %v2294 = vadd.f32 %v2031, %v2293
        %2295 = vmatmul.bf16.gmra.mxu0 %v2167
        %v2296 = vpop.f32.mrf.mxu0
        %v2297 = vadd.f32 %v2036, %v2296
        %v2298 = vpop.f32.mrf.mxu0
        %v2299 = vadd.f32 %v2041, %v2298
        %2300 = vmatmul.bf16.gmra.mxu0 %v2168
        %v2301 = vpop.f32.mrf.mxu0
        %v2302 = vadd.f32 %v2046, %v2301
        %v2303 = vpop.f32.mrf.mxu0
        %v2304 = vadd.f32 %v2051, %v2303
        %2305 = vmatmul.bf16.gmra.mxu0 %v2169
        %v2306 = vpop.f32.mrf.mxu0
        %v2307 = vadd.f32 %v2056, %v2306
        %v2308 = vpop.f32.mrf.mxu0
        %v2309 = vadd.f32 %v2061, %v2308
        %2310 = vmatmul.bf16.gmra.mxu0 %v2170
        %v2311 = vpop.f32.mrf.mxu0
        %v2312 = vadd.f32 %v2066, %v2311
        %v2313 = vpop.f32.mrf.mxu0
        %v2314 = vadd.f32 %v2071, %v2313
        %2315 = vmatmul.bf16.gmra.mxu0 %v2171
        %v2316 = vpop.f32.mrf.mxu0
        %v2317 = vadd.f32 %v2076, %v2316
        %v2318 = vpop.f32.mrf.mxu0
        %v2319 = vadd.f32 %v2081, %v2318
        %2320 = vmatmul.bf16.gmra.mxu0 %v2172
        %v2321 = vpop.f32.mrf.mxu0
        %v2322 = vadd.f32 %v2086, %v2321
        %v2323 = vpop.f32.mrf.mxu0
        %v2324 = vadd.f32 %v2091, %v2323
        %2325 = vdwg.mxu0
        %v2326 = vmax.f32 %v2247, 0.0
        %v2327 = vmax.f32 %v2249, 0.0
        %v2328 = vmax.f32 %v2252, 0.0
        %v2329 = vmax.f32 %v2254, 0.0
        %v2330 = vmax.f32 %v2257, 0.0
        %v2331 = vmax.f32 %v2259, 0.0
        %v2332 = vmax.f32 %v2262, 0.0
        %v2333 = vmax.f32 %v2264, 0.0
        %v2334 = vmax.f32 %v2267, 0.0
        %v2335 = vmax.f32 %v2269, 0.0
        %v2336 = vmax.f32 %v2272, 0.0
        %v2337 = vmax.f32 %v2274, 0.0
        %v2338 = vmax.f32 %v2277, 0.0
        %v2339 = vmax.f32 %v2279, 0.0
        %v2340 = vmax.f32 %v2282, 0.0
        %v2341 = vmax.f32 %v2284, 0.0
        %v2342 = vmax.f32 %v2287, 0.0
        %v2343 = vmax.f32 %v2289, 0.0
        %v2344 = vmax.f32 %v2292, 0.0
        %v2345 = vmax.f32 %v2294, 0.0
        %v2346 = vmax.f32 %v2297, 0.0
        %v2347 = vmax.f32 %v2299, 0.0
        %v2348 = vmax.f32 %v2302, 0.0
        %v2349 = vmax.f32 %v2304, 0.0
        %v2350 = vmax.f32 %v2307, 0.0
        %v2351 = vmax.f32 %v2309, 0.0
        %v2352 = vmax.f32 %v2312, 0.0
        %v2353 = vmax.f32 %v2314, 0.0
        %v2354 = vmax.f32 %v2317, 0.0
        %v2355 = vmax.f32 %v2319, 0.0
        %v2356 = vmax.f32 %v2322, 0.0
        %v2357 = vmax.f32 %v2324, 0.0
        %v2358 = vpack.c.bf16 %v2327, %v2326
        %v2359 = vpack.c.bf16 %v2329, %v2328
        %v2360 = vpack.c.bf16 %v2331, %v2330
        %v2361 = vpack.c.bf16 %v2333, %v2332
        %v2362 = vpack.c.bf16 %v2335, %v2334
        %v2363 = vpack.c.bf16 %v2337, %v2336
        %v2364 = vpack.c.bf16 %v2339, %v2338
        %v2365 = vpack.c.bf16 %v2341, %v2340
        %v2366 = vpack.c.bf16 %v2343, %v2342
        %v2367 = vpack.c.bf16 %v2345, %v2344
        %v2368 = vpack.c.bf16 %v2347, %v2346
        %v2369 = vpack.c.bf16 %v2349, %v2348
        %v2370 = vpack.c.bf16 %v2351, %v2350
        %v2371 = vpack.c.bf16 %v2353, %v2352
        %v2372 = vpack.c.bf16 %v2355, %v2354
        %v2373 = vpack.c.bf16 %v2357, %v2356
        %v2374 = vld [vmem:[%s12] sm:$0xf]
        %v2375 = vld [vmem:[%s13] sm:$0xf]
        %2377 = vset.pattern.permute.xlu0 0
        %2378 = vperm.xlu0 %2377, %v2375
        %v2379 = vpop.permute.xlu0 %2378
        %2382 = vst [vmem:[#allocation1] ss:$4 sm:$0xff] %v2374
        %v2383 = vld.sshfl [vmem:[#allocation1] sm:$0xff pattern:$0x73625140]
        %v2384 = vld.sshfl [vmem:[#allocation1 + $0x8] sm:$0xff pattern:$0x73625140]
        %2387 = vmatpush.bf16.msra.mxu0 %v2365
        %2388 = vmatpush.bf16.msra.mxu0 %v2364
        %2389 = vmatpush.bf16.msra.mxu0 %v2363
        %2390 = vmatpush.bf16.msra.mxu0 %v2362
        %2391 = vmatpush.bf16.msra.mxu0 %v2361
        %2392 = vmatpush.bf16.msra.mxu0 %v2360
        %2393 = vmatpush.bf16.msra.mxu0 %v2359
        %2394 = vmatpush.bf16.msra.mxu0 %v2358
        %2395 = vmatmul.bf16.gmra.mxu0 %v2383
        %v2396 = vpop.f32.mrf.mxu0
        %v2397 = vadd.f32 %v2379, %v2396
        %v2398 = vpop.f32.mrf.mxu0
        %2399 = vdwg.mxu0
        %2400 = vmatpush.bf16.msra.mxu0 %v2373
        %2401 = vmatpush.bf16.msra.mxu0 %v2372
        %2402 = vmatpush.bf16.msra.mxu0 %v2371
        %2403 = vmatpush.bf16.msra.mxu0 %v2370
        %2404 = vmatpush.bf16.msra.mxu0 %v2369
        %2405 = vmatpush.bf16.msra.mxu0 %v2368
        %2406 = vmatpush.bf16.msra.mxu0 %v2367
        %2407 = vmatpush.bf16.msra.mxu0 %v2366
        %2408 = vmatmul.bf16.gmra.mxu0 %v2384
        %v2409 = vpop.f32.mrf.mxu0
        %v2410 = vadd.f32 %v2397, %v2409
        %v2411 = vpop.f32.mrf.mxu0
        %2412 = vdwg.mxu0
        %v2413 = vpack.c.bf16 %v1866, %v1866
        %2414 = vst [vmem:[%s566] sm:$0x3] %v2413
        %v2415 = vpack.c.bf16 %v2410, %v2410
        %v2416 = vld [vmem:[%s585] sm:$0x3]
        %2417 = vmatpush.bf16.xpose.msra.mxu0 0
        %2418 = vmatpush.bf16.xpose.msra.mxu0 0
        %2419 = vmatpush.bf16.xpose.msra.mxu0 0
        %2420 = vmatpush.bf16.xpose.msra.mxu0 0
        %2421 = vmatpush.bf16.xpose.msra.mxu0 0
        %2422 = vmatpush.bf16.xpose.msra.mxu0 0
        %2423 = vmatpush.bf16.xpose.msra.mxu0 0
        %2424 = vmatpush.bf16.xpose.msra.mxu0 %v2416
        %2425 = vmatmul.bf16.gmra.mxu0 %v2415
        %v2426 = vpop.f32.mrf.mxu0
        %v2427 = vadd.f32 0.0, %v2426
        %v2428 = vpop.f32.mrf.mxu0
        %2429 = vdwg.mxu0
        %v2430 = vld [vmem:[%s559] sm:$0xf]
        %v2431 = vadd.f32 %v2430, %v2427
        %vm2432 = vcmask 27648
        %2433 = vst.msk [vmem:[%s559] sm:$0xf] %vm2432, %v2431
        %s2434 = sand.u32 %s376, 1
        %s2435 = scalar_lea.sflag [#allocation3], %s2434
        %s2436 = sand.u32 %s376, 1
        %s2437 = smul.addr %s2436, 4
        %s2438 = scalar_lea.vmem [#allocation2], %s2437
        %s2439 = sand.u32 %s406, 1
        %s2440 = scalar_lea.sflag [#allocation5], %s2439
        %s2441 = sand.u32 %s406, 1
        %s2442 = smul.addr %s2441, 2
        %s2443 = scalar_lea.vmem [#allocation4], %s2442
        // Predicated region
        $region81: #{tpu_custom_call.1} parent=75 // pred_check
          %p2444 = pneg %p386
        $region82: #{tpu_custom_call.1} parent=75 // pred_check_branch
          %2446 = sbr.rel (%p2444) target = $region84
        $region83: #{tpu_custom_call.1} parent=75 // pred_region
          %s2447 = smul.u32 %s38, 2
          %s2448 = sadd.s32 %s2447, %s39
          %2450 = vsyncadd %s2435, 0
          %s2451 = smul.addr %s2448, 4
          %s2452 = scalar_lea.hbm %s14, %s2451
          %s2454 = sshll.u32 %s2438, 4
          %s2455 = int_to_ptr.vmem [resolvable:$true] %s2454
          %s2456 = sshll.u32 %s2452, 4
          %s2457 = int_to_ptr.hbm [resolvable:$true] %s2456
          %2459 = dma.vmem_to_hbm [thread:$0]  %s2455, 64, %s2457, %s2435
        $region84: #{tpu_custom_call.1} parent=75 // pred_fallthru
          _
        // Predicated region
        $region85: #{tpu_custom_call.1} parent=75 // pred_check
          %p2460 = pneg %p416
        $region86: #{tpu_custom_call.1} parent=75 // pred_check_branch
          %2462 = sbr.rel (%p2460) target = $region88
        $region87: #{tpu_custom_call.1} parent=75 // pred_region
          %s2463 = sadd.s32 %s39, %s40
          %2465 = vsyncadd %s2440, 0
          %s2466 = smul.addr %s38, 2
          %s2467 = sadd.s32 %s2463, %s2466
          %s2468 = smul.addr %s2467, 2
          %s2469 = scalar_lea.hbm %s15, %s2468
          %s2471 = sshll.u32 %s2443, 4
          %s2472 = int_to_ptr.vmem [resolvable:$true] %s2471
          %s2473 = sshll.u32 %s2469, 4
          %s2474 = int_to_ptr.hbm [resolvable:$true] %s2473
          %2476 = dma.vmem_to_hbm [thread:$0]  %s2472, 32, %s2474, %s2440
        $region88: #{tpu_custom_call.1} parent=75 // pred_fallthru
          _
      $region76: #{tpu_custom_call.1} parent=5 // pred_fallthru
        _
      %p2477 = scmp.le.s32.totalorder 2, %s28
      // Predicated region
      $region89: #{tpu_custom_call.1} parent=5 // pred_check
        %p2478 = pneg %p2477
      $region90: #{tpu_custom_call.1} parent=5 // pred_check_branch
        %2480 = sbr.rel (%p2478) target = $region92
      $region91: #{tpu_custom_call.1} parent=5 // pred_region
        %s2481 = ssub.s32 %s28, 2
        // Predicated region
        $region93: #{tpu_custom_call.1} parent=91 // pred_check
          %p2482 = pneg %p392
        $region94: #{tpu_custom_call.1} parent=91 // pred_check_branch
          %2484 = sbr.rel (%p2482) target = $region96
        $region95: #{tpu_custom_call.1} parent=91 // pred_region
          %s2485 = sand.u32 %s377, 1
          %s2486 = scalar_lea.sflag [#allocation3], %s2485
          %s2487 = sand.u32 %s377, 1
          %s2488 = smul.addr %s2487, 4
          %s2489 = scalar_lea.vmem [#allocation2], %s2488
          %2491 = dma.done %s2486, 64
        $region96: #{tpu_custom_call.1} parent=91 // pred_fallthru
          _
        // Predicated region
        $region97: #{tpu_custom_call.1} parent=91 // pred_check
          %p2492 = pneg %p422
        $region98: #{tpu_custom_call.1} parent=91 // pred_check_branch
          %2494 = sbr.rel (%p2492) target = $region100
        $region99: #{tpu_custom_call.1} parent=91 // pred_region
          %s2495 = sand.u32 %s407, 1
          %s2496 = scalar_lea.sflag [#allocation5], %s2495
          %s2497 = sand.u32 %s407, 1
          %s2498 = smul.addr %s2497, 2
          %s2499 = scalar_lea.vmem [#allocation4], %s2498
          %2501 = dma.done %s2496, 32
        $region100: #{tpu_custom_call.1} parent=91 // pred_fallthru
          _
      $region92: #{tpu_custom_call.1} parent=5 // pred_fallthru
        _
    $region6: #{tpu_custom_call.1} parent=1 // loop_footer
      %s32 = sadd.s32 1, %s28
    $region7: #{tpu_custom_call.1} parent=1 // loop_footer_branch
      %27 = sbr.rel target = $region3
    $region8: #{tpu_custom_call.1} parent=1 // loop_exit
      _
    %2502 = vsyncpa [#allocation3], 1
    %s2503 = scalar_lea.sflag [#allocation3], 1
    %2504 = vsyncpa %s2503, 1
    %2505 = vsyncpa [#allocation5], 1
    %s2506 = scalar_lea.sflag [#allocation5], 1
    %2507 = vsyncpa %s2506, 1

</llo_original>
